<compile_context>
chip_gen: v5e
topology: v5e:2x2
jax: 0.10.0
libtpu: 0.0.40
codegen_flags: <defaults>
</compile_context>

<pallas_src>
import functools

import jax
import jax.numpy as jnp
from jax import lax
from jax.experimental import pallas as pl
from jax.experimental.pallas import tpu as pltpu


# ----------------------------------------------------------------------------
# Fused bottleneck kernel.  One grid step = one whole NHWC image.
#   x_ref   : (1, H, W, Cin)  f32   activation block (auto-pipelined)
#   w1_ref  : (Cin, P)        bf16  1x1 conv #1, BN1 scale folded in
#   w3c_ref : (3, 3P, P)      bf16  3x3 conv, dw stacked along in-channels,
#                                   BN2 scale folded in
#   w2_ref  : (P, 4P)         bf16  1x1 conv #2, BN3 scale folded in
#   sh*_ref : (1, C)          f32   folded BN shift (absorbs conv bias)
#   o_ref   : (1, H, W, 4P)   f32   output block (lane-dense last dim)
# ----------------------------------------------------------------------------
def _bottleneck_kernel(x_ref, w1_ref, w3c_ref, w2_ref,
                       sh1_ref, sh2_ref, sh3_ref, o_ref):
    _, hgt, wid, cin = x_ref.shape
    p = w1_ref.shape[1]
    c4 = w2_ref.shape[1]
    hw = hgt * wid

    # ---- stage 1: 1x1 conv (+ folded BN1 scale) + shift + relu -------------
    x2d = x_ref[...].reshape(hw, cin)            # free reshape (wid % 8 == 0)
    h1 = jnp.dot(x2d.astype(jnp.bfloat16), w1_ref[...],
                 preferred_element_type=jnp.float32)            # (hw, p)
    h1 = jnp.maximum(h1 + sh1_ref[...], 0.0)
    h1 = h1.reshape(hgt, wid, p)

    # ---- stage 2: 3x3 conv, stride 1, pad 1 (+ folded BN2 scale) -----------
    # Width (dw) shifts: XLU sublane roll + zero of the single wrapped column
    # (conv zero-padding applies to the stage-1 OUTPUT, so the wrapped column
    # must be exactly zero).  The three shifts are concatenated on the channel
    # axis so each MXU call contracts K = 3*p instead of K = p.
    col = lax.broadcasted_iota(jnp.int32, (1, wid, 1), 1)
    h1_wm1 = jnp.where(col > 0, pltpu.roll(h1, shift=1, axis=1), 0.0)        # h1[h, w-1]
    h1_wp1 = jnp.where(col < wid - 1,
                       pltpu.roll(h1, shift=wid - 1, axis=1), 0.0)           # h1[h, w+1]
    h1cat = jnp.concatenate([h1_wm1, h1, h1_wp1], axis=-1)                   # (hgt, wid, 3p)
    h1cat = h1cat.reshape(hw, 3 * p).astype(jnp.bfloat16)

    # Height (dh) shifts: row offsets of +-wid are sublane-tile aligned, so the
    # slices/concats below are pure tile selection (no relayout copies).
    zrows = jnp.zeros((wid, 3 * p), jnp.bfloat16)
    h1_hm1 = jnp.concatenate([zrows, h1cat[:hw - wid]], axis=0)   # h1[h-1, w+dw-1]
    h1_hp1 = jnp.concatenate([h1cat[wid:], zrows], axis=0)        # h1[h+1, w+dw-1]

    # Register accumulation (no scratch ref, no zero-fill / RMW through VMEM).
    acc = jnp.dot(h1cat, w3c_ref[1], preferred_element_type=jnp.float32)
    acc = acc + jnp.dot(h1_hm1, w3c_ref[0], preferred_element_type=jnp.float32)
    acc = acc + jnp.dot(h1_hp1, w3c_ref[2], preferred_element_type=jnp.float32)
    h2 = jnp.maximum(acc + sh2_ref[...], 0.0)                     # (hw, p)

    # ---- stage 3: 1x1 conv (+ folded BN3 scale) + identity residual + relu -
    y = jnp.dot(h2.astype(jnp.bfloat16), w2_ref[...],
                preferred_element_type=jnp.float32)               # (hw, c4)
    res = x_ref[...].reshape(hw, cin)            # re-read VMEM block (bounds vreg live range)
    y = y + sh3_ref[...] + res
    o_ref[...] = jnp.maximum(y, 0.0).reshape(1, hgt, wid, c4).astype(o_ref.dtype)


# ----------------------------------------------------------------------------
# Parameter construction (deterministic) and BN folding
# ----------------------------------------------------------------------------
def make_params(key, in_planes, planes):
    out_planes = planes * 4
    ks = jax.random.split(key, 9)

    def conv_w(k, shape):  # HWIO
        return 0.1 * jax.random.normal(k, shape, jnp.float32)

    def bn(k, c):
        kg, kb, km, kv = jax.random.split(k, 4)
        gamma = 1.0 + 0.1 * jax.random.normal(kg, (c,), jnp.float32)
        beta = 0.1 * jax.random.normal(kb, (c,), jnp.float32)
        mean = 0.1 * jax.random.normal(km, (c,), jnp.float32)
        var = 1.0 + 0.1 * jax.random.uniform(kv, (c,), jnp.float32)
        return gamma, beta, mean, var

    return {
        "w1": conv_w(ks[0], (1, 1, in_planes, planes)),
        "b1": 0.1 * jax.random.normal(ks[1], (planes,), jnp.float32),
        "w3": conv_w(ks[2], (3, 3, planes, planes)),
        "b3": 0.1 * jax.random.normal(ks[3], (planes,), jnp.float32),
        "w2": conv_w(ks[4], (1, 1, planes, out_planes)),
        "b2": 0.1 * jax.random.normal(ks[5], (out_planes,), jnp.float32),
        "bn1": bn(ks[6], planes),
        "bn2": bn(ks[7], planes),
        "bn3": bn(ks[8], out_planes),
    }


def fold_bn(conv_bias, bn_params, eps=1e-5):
    gamma, beta, mean, var = bn_params
    s = gamma / jnp.sqrt(var + eps)
    shift = (conv_bias - mean) * s + beta
    return s.reshape(1, -1), shift.reshape(1, -1)


def _vmem_limit_bytes():
    # Re-derive the VMEM budget per TPU generation (v7x: 64 MiB; v5e/v6e: 128 MiB).
    try:
        cap = int(pltpu.get_tpu_info().vmem_capacity_bytes)
    except Exception:  # conservative fallback (safe on every generation)
        cap = 64 * 1024 * 1024
    return min(100 * 1024 * 1024, (cap * 3) // 4)


# ----------------------------------------------------------------------------
# BottleNeck forward (wrapper): NCHW in / NCHW out, fused NHWC kernel inside.
# ----------------------------------------------------------------------------
@jax.jit
def bottleneck_forward(x_nchw, params):
    n, cin, hgt, wid = x_nchw.shape
    p = params["w1"].shape[3]
    c4 = params["w2"].shape[3]
    if cin != c4:
        raise ValueError("identity shortcut requires in_planes == 4 * planes")
    if wid % 8 != 0:
        raise ValueError("W must be a multiple of 8 (sublane tile)")

    # NCHW -> NHWC so channels sit on the lane axis (lane-dense output blocks).
    x = jnp.transpose(x_nchw, (0, 2, 3, 1))

    # Fold BN scales into the conv weights on the host; only shifts stay in-kernel.
    s1, sh1 = fold_bn(params["b1"], params["bn1"])
    s2, sh2 = fold_bn(params["b3"], params["bn2"])
    s3, sh3 = fold_bn(params["b2"], params["bn3"])
    w1 = (params["w1"][0, 0] * s1).astype(jnp.bfloat16)                     # (cin, p)
    w3 = (params["w3"] * s2.reshape(1, 1, 1, -1)).astype(jnp.bfloat16)      # (3,3,p,p)
    w3c = w3.reshape(3, 3 * p, p)          # stack dw along the in-channel (K) axis
    w2 = (params["w2"][0, 0] * s3).astype(jnp.bfloat16)                     # (p, c4)

    grid_spec = pltpu.PrefetchScalarGridSpec(
        num_scalar_prefetch=0,
        grid=(n,),
        in_specs=[
            pl.BlockSpec((1, hgt, wid, cin), lambda b: (b, 0, 0, 0)),   # activations
            pl.BlockSpec((cin, p), lambda b: (0, 0)),                   # w1 (bf16)
            pl.BlockSpec((3, 3 * p, p), lambda b: (0, 0, 0)),           # w3 stacked (bf16)
            pl.BlockSpec((p, c4), lambda b: (0, 0)),                    # w2 (bf16)
            pl.BlockSpec((1, p), lambda b: (0, 0)),                     # sh1
            pl.BlockSpec((1, p), lambda b: (0, 0)),                     # sh2
            pl.BlockSpec((1, c4), lambda b: (0, 0)),                    # sh3
        ],
        out_specs=pl.BlockSpec((1, hgt, wid, c4), lambda b: (b, 0, 0, 0)),
    )

    out = pl.pallas_call(
        _bottleneck_kernel,
        out_shape=jax.ShapeDtypeStruct((n, hgt, wid, c4), x.dtype),
        grid_spec=grid_spec,
        compiler_params=pltpu.CompilerParams(
            # Batch axis is independent -> shard across TensorCores where available.
            dimension_semantics=("parallel",),
            vmem_limit_bytes=_vmem_limit_bytes()),
    )(x, w1, w3c, w2, sh1, sh2, sh3)

    return jnp.transpose(out, (0, 3, 1, 2))  # back to NCHW


# ----------------------------------------------------------------------------
# Pure-JAX reference (correctness check)
# ----------------------------------------------------------------------------
def bottleneck_ref(x_nchw, params):
    x = jnp.transpose(x_nchw, (0, 2, 3, 1))
    dn = ("NHWC", "HWIO", "NHWC")
    prec = lax.Precision.HIGHEST

    def bn_apply(y, bias, bn_params):
        s, sh = fold_bn(bias, bn_params)
        return y * s.reshape(1, 1, 1, -1) + sh.reshape(1, 1, 1, -1)

    h1 = lax.conv_general_dilated(x, params["w1"], (1, 1), "VALID",
                                  dimension_numbers=dn, precision=prec)
    h1 = jax.nn.relu(bn_apply(h1, params["b1"], params["bn1"]))
    h2 = lax.conv_general_dilated(h1, params["w3"], (1, 1), "SAME",
                                  dimension_numbers=dn, precision=prec)
    h2 = jax.nn.relu(bn_apply(h2, params["b3"], params["bn2"]))
    h3 = lax.conv_general_dilated(h2, params["w2"], (1, 1), "VALID",
                                  dimension_numbers=dn, precision=prec)
    h3 = bn_apply(h3, params["b2"], params["bn3"])
    out = jax.nn.relu(h3 + x)
    return jnp.transpose(out, (0, 3, 1, 2))


if __name__ == "__main__":
    key = jax.random.PRNGKey(0)
    k_x, k_p = jax.random.split(key)

    n, planes, hgt, wid = 2, 32, 16, 16
    in_planes = planes * 4            # identity shortcut: in_planes == 4*planes

    x = jax.random.normal(k_x, (n, in_planes, hgt, wid), jnp.float32)   # NCHW, as PyTorch
    params = make_params(k_p, in_planes, planes)

    out = jax.block_until_ready(bottleneck_forward(x, params))
    ref = jax.block_until_ready(bottleneck_ref(x, params))

    assert out.shape == (n, planes * 4, hgt, wid)
    max_err = float(jnp.max(jnp.abs(out - ref)))
    # Tolerance loosened vs the pure-f32 version because the MXU operands are
    # bf16 (accumulation and all elementwise/residual math remain f32).
    assert jnp.allclose(out, ref, atol=1e-1, rtol=1e-2), (
        f"mismatch vs reference, max abs err = {max_err}")

    print("KERNEL_OK")
</pallas_src>

<mosaic_0001>
module attributes {stable_mosaic.version = 11 : i64} {
  func.func @_bottleneck_kernel(%arg0: i32, %arg1: memref<1x16x16x128xf32, #tpu.memory_space<vmem>>, %arg2: memref<128x32xbf16, #tpu.memory_space<vmem>>, %arg3: memref<3x96x32xbf16, #tpu.memory_space<vmem>>, %arg4: memref<32x128xbf16, #tpu.memory_space<vmem>>, %arg5: memref<1x32xf32, #tpu.memory_space<vmem>>, %arg6: memref<1x32xf32, #tpu.memory_space<vmem>>, %arg7: memref<1x128xf32, #tpu.memory_space<vmem>>, %arg8: memref<1x16x16x128xf32, #tpu.memory_space<vmem>>) attributes {dimension_semantics = [#tpu.dimension_semantics<parallel>], iteration_bounds = array<i64: 2>, scalar_prefetch = 0 : i64, scratch_operands = 0 : i64, tpu.core_type = #tpu.core_type<tc>, window_params = [{transform_indices = @transform_0, window_bounds = array<i64: 1, 16, 16, 128>}, {pipeline_mode = #tpu.pipeline_mode<synchronous>, transform_indices = @transform_1, window_bounds = array<i64: 128, 32>}, {pipeline_mode = #tpu.pipeline_mode<synchronous>, transform_indices = @transform_2, window_bounds = array<i64: 3, 96, 32>}, {pipeline_mode = #tpu.pipeline_mode<synchronous>, transform_indices = @transform_3, window_bounds = array<i64: 32, 128>}, {pipeline_mode = #tpu.pipeline_mode<synchronous>, transform_indices = @transform_4, window_bounds = array<i64: 1, 32>}, {pipeline_mode = #tpu.pipeline_mode<synchronous>, transform_indices = @transform_5, window_bounds = array<i64: 1, 32>}, {pipeline_mode = #tpu.pipeline_mode<synchronous>, transform_indices = @transform_6, window_bounds = array<i64: 1, 128>}, {transform_indices = @transform_7, window_bounds = array<i64: 1, 16, 16, 128>}]} {
    %c0 = arith.constant 0 : index
    %c0_0 = arith.constant 0 : index
    %c0_1 = arith.constant 0 : index
    %c0_2 = arith.constant 0 : index
    %0 = vector.load %arg1[%c0, %c0_0, %c0_1, %c0_2] : memref<1x16x16x128xf32, #tpu.memory_space<vmem>>, vector<1x16x16x128xf32>
    %1 = vector.shape_cast %0 : vector<1x16x16x128xf32> to vector<256x128xf32>
    %2 = arith.truncf %1 : vector<256x128xf32> to vector<256x128xbf16>
    %c0_3 = arith.constant 0 : index
    %c0_4 = arith.constant 0 : index
    %3 = vector.load %arg2[%c0_3, %c0_4] : memref<128x32xbf16, #tpu.memory_space<vmem>>, vector<128x32xbf16>
    %cst = arith.constant dense<0.000000e+00> : vector<256x32xf32>
    %4 = tpu.matmul %2, %3, %cst {dimension_numbers = #tpu.dot_dimension_numbers<[1], [0], [0], [1], [0, 0, 1, 1], [], []>} : vector<256x128xbf16>, vector<128x32xbf16>, vector<256x32xf32> -> vector<256x32xf32>
    %c0_5 = arith.constant 0 : index
    %c0_6 = arith.constant 0 : index
    %5 = vector.load %arg5[%c0_5, %c0_6] : memref<1x32xf32, #tpu.memory_space<vmem>>, vector<1x32xf32>
    %6 = vector.broadcast %5 : vector<1x32xf32> to vector<256x32xf32>
    %7 = arith.addf %4, %6 : vector<256x32xf32>
    %cst_7 = arith.constant 0.000000e+00 : f32
    %8 = vector.broadcast %cst_7 : f32 to vector<256x32xf32>
    %9 = arith.maximumf %7, %8 : vector<256x32xf32>
    %10 = vector.shape_cast %9 : vector<256x32xf32> to vector<16x16x32xf32>
    %11 = tpu.iota {dimensions = array<i32: 1>} : vector<1x16x1xi32>
    %c0_i32 = arith.constant 0 : i32
    %12 = vector.broadcast %c0_i32 : i32 to vector<1x16x1xi32>
    %13 = arith.cmpi sgt, %11, %12 : vector<1x16x1xi32>
    %c1_i32 = arith.constant 1 : i32
    %14 = tpu.dynamic_rotate %10 by %c1_i32 dim 1 : vector<16x16x32xf32>, i32 -> vector<16x16x32xf32>
    %cst_8 = arith.constant 0.000000e+00 : f32
    %15 = vector.shape_cast %13 : vector<1x16x1xi1> to vector<1x16x1xi1>
    %16 = vector.broadcast %15 : vector<1x16x1xi1> to vector<16x16x32xi1>
    %17 = vector.broadcast %cst_8 : f32 to vector<16x16x32xf32>
    %18 = arith.select %16, %14, %17 : vector<16x16x32xi1>, vector<16x16x32xf32>
    %c15_i32 = arith.constant 15 : i32
    %19 = vector.broadcast %c15_i32 : i32 to vector<1x16x1xi32>
    %20 = arith.cmpi slt, %11, %19 : vector<1x16x1xi32>
    %c15_i32_9 = arith.constant 15 : i32
    %21 = tpu.dynamic_rotate %10 by %c15_i32_9 dim 1 : vector<16x16x32xf32>, i32 -> vector<16x16x32xf32>
    %cst_10 = arith.constant 0.000000e+00 : f32
    %22 = vector.shape_cast %20 : vector<1x16x1xi1> to vector<1x16x1xi1>
    %23 = vector.broadcast %22 : vector<1x16x1xi1> to vector<16x16x32xi1>
    %24 = vector.broadcast %cst_10 : f32 to vector<16x16x32xf32>
    %25 = arith.select %23, %21, %24 : vector<16x16x32xi1>, vector<16x16x32xf32>
    %26 = tpu.concatenate %18, %10, %25 in 2 : vector<16x16x32xf32>, vector<16x16x32xf32>, vector<16x16x32xf32> -> vector<16x16x96xf32>
    %27 = vector.shape_cast %26 : vector<16x16x96xf32> to vector<256x96xf32>
    %28 = arith.truncf %27 : vector<256x96xf32> to vector<256x96xbf16>
    %cst_11 = arith.constant 0.000000e+00 : bf16
    %29 = vector.broadcast %cst_11 : bf16 to vector<16x96xbf16>
    %30 = vector.extract_strided_slice %28 {offsets = [0, 0], sizes = [240, 96], strides = [1, 1]} : vector<256x96xbf16> to vector<240x96xbf16>
    %31 = tpu.concatenate %29, %30 in 0 : vector<16x96xbf16>, vector<240x96xbf16> -> vector<256x96xbf16>
    %32 = vector.extract_strided_slice %28 {offsets = [16, 0], sizes = [240, 96], strides = [1, 1]} : vector<256x96xbf16> to vector<240x96xbf16>
    %33 = tpu.concatenate %32, %29 in 0 : vector<240x96xbf16>, vector<16x96xbf16> -> vector<256x96xbf16>
    %c1 = arith.constant 1 : index
    %c0_12 = arith.constant 0 : index
    %c0_13 = arith.constant 0 : index
    %34 = vector.load %arg3[%c1, %c0_12, %c0_13] : memref<3x96x32xbf16, #tpu.memory_space<vmem>>, vector<1x96x32xbf16>
    %35 = vector.shape_cast %34 : vector<1x96x32xbf16> to vector<96x32xbf16>
    %cst_14 = arith.constant dense<0.000000e+00> : vector<256x32xf32>
    %36 = tpu.matmul %28, %35, %cst_14 {dimension_numbers = #tpu.dot_dimension_numbers<[1], [0], [0], [1], [0, 0, 1, 1], [], []>} : vector<256x96xbf16>, vector<96x32xbf16>, vector<256x32xf32> -> vector<256x32xf32>
    %c0_15 = arith.constant 0 : index
    %c0_16 = arith.constant 0 : index
    %c0_17 = arith.constant 0 : index
    %37 = vector.load %arg3[%c0_15, %c0_16, %c0_17] : memref<3x96x32xbf16, #tpu.memory_space<vmem>>, vector<1x96x32xbf16>
    %38 = vector.shape_cast %37 : vector<1x96x32xbf16> to vector<96x32xbf16>
    %cst_18 = arith.constant dense<0.000000e+00> : vector<256x32xf32>
    %39 = tpu.matmul %31, %38, %cst_18 {dimension_numbers = #tpu.dot_dimension_numbers<[1], [0], [0], [1], [0, 0, 1, 1], [], []>} : vector<256x96xbf16>, vector<96x32xbf16>, vector<256x32xf32> -> vector<256x32xf32>
    %40 = arith.addf %36, %39 : vector<256x32xf32>
    %c2 = arith.constant 2 : index
    %c0_19 = arith.constant 0 : index
    %c0_20 = arith.constant 0 : index
    %41 = vector.load %arg3[%c2, %c0_19, %c0_20] : memref<3x96x32xbf16, #tpu.memory_space<vmem>>, vector<1x96x32xbf16>
    %42 = vector.shape_cast %41 : vector<1x96x32xbf16> to vector<96x32xbf16>
    %cst_21 = arith.constant dense<0.000000e+00> : vector<256x32xf32>
    %43 = tpu.matmul %33, %42, %cst_21 {dimension_numbers = #tpu.dot_dimension_numbers<[1], [0], [0], [1], [0, 0, 1, 1], [], []>} : vector<256x96xbf16>, vector<96x32xbf16>, vector<256x32xf32> -> vector<256x32xf32>
    %44 = arith.addf %40, %43 : vector<256x32xf32>
    %c0_22 = arith.constant 0 : index
    %c0_23 = arith.constant 0 : index
    %45 = vector.load %arg6[%c0_22, %c0_23] : memref<1x32xf32, #tpu.memory_space<vmem>>, vector<1x32xf32>
    %46 = vector.broadcast %45 : vector<1x32xf32> to vector<256x32xf32>
    %47 = arith.addf %44, %46 : vector<256x32xf32>
    %cst_24 = arith.constant 0.000000e+00 : f32
    %48 = vector.broadcast %cst_24 : f32 to vector<256x32xf32>
    %49 = arith.maximumf %47, %48 : vector<256x32xf32>
    %50 = arith.truncf %49 : vector<256x32xf32> to vector<256x32xbf16>
    %c0_25 = arith.constant 0 : index
    %c0_26 = arith.constant 0 : index
    %51 = vector.load %arg4[%c0_25, %c0_26] : memref<32x128xbf16, #tpu.memory_space<vmem>>, vector<32x128xbf16>
    %cst_27 = arith.constant dense<0.000000e+00> : vector<256x128xf32>
    %52 = tpu.matmul %50, %51, %cst_27 {dimension_numbers = #tpu.dot_dimension_numbers<[1], [0], [0], [1], [0, 0, 1, 1], [], []>} : vector<256x32xbf16>, vector<32x128xbf16>, vector<256x128xf32> -> vector<256x128xf32>
    %c0_28 = arith.constant 0 : index
    %c0_29 = arith.constant 0 : index
    %c0_30 = arith.constant 0 : index
    %c0_31 = arith.constant 0 : index
    %53 = vector.load %arg1[%c0_28, %c0_29, %c0_30, %c0_31] : memref<1x16x16x128xf32, #tpu.memory_space<vmem>>, vector<1x16x16x128xf32>
    %54 = vector.shape_cast %53 : vector<1x16x16x128xf32> to vector<256x128xf32>
    %c0_32 = arith.constant 0 : index
    %c0_33 = arith.constant 0 : index
    %55 = vector.load %arg7[%c0_32, %c0_33] : memref<1x128xf32, #tpu.memory_space<vmem>>, vector<1x128xf32>
    %56 = vector.broadcast %55 : vector<1x128xf32> to vector<256x128xf32>
    %57 = arith.addf %52, %56 : vector<256x128xf32>
    %58 = arith.addf %57, %54 : vector<256x128xf32>
    %cst_34 = arith.constant 0.000000e+00 : f32
    %59 = vector.broadcast %cst_34 : f32 to vector<256x128xf32>
    %60 = arith.maximumf %58, %59 : vector<256x128xf32>
    %61 = vector.shape_cast %60 : vector<256x128xf32> to vector<1x16x16x128xf32>
    %c0_35 = arith.constant 0 : index
    %c0_36 = arith.constant 0 : index
    %c0_37 = arith.constant 0 : index
    %c0_38 = arith.constant 0 : index
    %62 = vector.load %arg8[%c0_35, %c0_36, %c0_37, %c0_38] : memref<1x16x16x128xf32, #tpu.memory_space<vmem>>, vector<1x16x16x128xf32>
    tpu.vector_store %arg8[%c0_35, %c0_36, %c0_37, %c0_38], %61 {strides = array<i32>} : memref<1x16x16x128xf32, #tpu.memory_space<vmem>>, vector<1x16x16x128xf32>,
    return
  }
  func.func @transform_0(%arg0: i32) -> (i32, i32, i32, i32) {
    %c0_i32 = arith.constant 0 : i32
    %c0_i32_0 = arith.constant 0 : i32
    %c0_i32_1 = arith.constant 0 : i32
    %c0_i32_2 = arith.constant 0 : i32
    return %arg0, %c0_i32, %c0_i32_0, %c0_i32_1 : i32, i32, i32, i32
  }
  func.func @transform_1(%arg0: i32) -> (i32, i32) {
    %c0_i32 = arith.constant 0 : i32
    %c0_i32_0 = arith.constant 0 : i32
    %c0_i32_1 = arith.constant 0 : i32
    return %c0_i32, %c0_i32_0 : i32, i32
  }
  func.func @transform_2(%arg0: i32) -> (i32, i32, i32) {
    %c0_i32 = arith.constant 0 : i32
    %c0_i32_0 = arith.constant 0 : i32
    %c0_i32_1 = arith.constant 0 : i32
    %c0_i32_2 = arith.constant 0 : i32
    return %c0_i32, %c0_i32_0, %c0_i32_1 : i32, i32, i32
  }
  func.func @transform_3(%arg0: i32) -> (i32, i32) {
    %c0_i32 = arith.constant 0 : i32
    %c0_i32_0 = arith.constant 0 : i32
    %c0_i32_1 = arith.constant 0 : i32
    return %c0_i32, %c0_i32_0 : i32, i32
  }
  func.func @transform_4(%arg0: i32) -> (i32, i32) {
    %c0_i32 = arith.constant 0 : i32
    %c0_i32_0 = arith.constant 0 : i32
    %c0_i32_1 = arith.constant 0 : i32
    return %c0_i32, %c0_i32_0 : i32, i32
  }
  func.func @transform_5(%arg0: i32) -> (i32, i32) {
    %c0_i32 = arith.constant 0 : i32
    %c0_i32_0 = arith.constant 0 : i32
    %c0_i32_1 = arith.constant 0 : i32
    return %c0_i32, %c0_i32_0 : i32, i32
  }
  func.func @transform_6(%arg0: i32) -> (i32, i32) {
    %c0_i32 = arith.constant 0 : i32
    %c0_i32_0 = arith.constant 0 : i32
    %c0_i32_1 = arith.constant 0 : i32
    return %c0_i32, %c0_i32_0 : i32, i32
  }
  func.func @transform_7(%arg0: i32) -> (i32, i32, i32, i32) {
    %c0_i32 = arith.constant 0 : i32
    %c0_i32_0 = arith.constant 0 : i32
    %c0_i32_1 = arith.constant 0 : i32
    %c0_i32_2 = arith.constant 0 : i32
    return %arg0, %c0_i32, %c0_i32_0, %c0_i32_1 : i32, i32, i32, i32
  }
}

</mosaic_0001>

<llo_original>
// kernel: bottleneck_forward.1
$region0: #{bottleneck_forward.1}
  #allocation0 [shape = 'u32[]', space=smem, size = 0x4, offset = 0x4, fixed_abs, tag = 'smem constant byte address 0x4 - core index']
  #allocation1 [shape = 'u32[72,128]{1,0:T(1,128)}', space=vmem, size = 0x9000, scoped, tag = 'internal scratch']
  %s0 = inlined_call_operand.vmem [shape: f32[2,16,16,128], index: 0, kind: input, shape index: {}]
  %s1 = inlined_call_operand.vmem [shape: bf16[128,32], index: 1, kind: input, shape index: {}]
  %s2 = inlined_call_operand.vmem [shape: bf16[3,96,32], index: 2, kind: input, shape index: {}]
  %s3 = inlined_call_operand.vmem [shape: bf16[32,128], index: 3, kind: input, shape index: {}]
  %s4 = inlined_call_operand.vmem [shape: f32[1,32], index: 4, kind: input, shape index: {}]
  %s5 = inlined_call_operand.vmem [shape: f32[1,32], index: 5, kind: input, shape index: {}]
  %s6 = inlined_call_operand.vmem [shape: f32[1,128], index: 6, kind: input, shape index: {}]
  %s7 = inlined_call_operand.hbm [shape: f32[2,16,16,128], index: 7, kind: output, shape index: {}]
  %s8 = sld [smem:[#allocation0]]
  $region61: #{bottleneck_forward.1} parent=0
    _
  %s10 = ssub.s32 1, %s8
  %s11 = scalar_select 0, %s10, %s8
  $region1: #{bottleneck_forward.1} parent=0
    #allocation2 [shape = 'u8[262144]{0}', space=vmem, size = 0x40000, scoped, tag = 'output window, operand 0']
    #allocation3 [shape = 's32[2]{0}', space=sflag, size = 0x8, scoped, tag = 'scoped memory for bottleneck_forward.1']
    %12 = vsyncpa [#allocation3], 0
    %s13 = scalar_lea.sflag [#allocation3], 1
    %14 = vsyncpa %s13, 0
    loop: start=0, step=1, limit=4
    $region2: #{bottleneck_forward.1} parent=1 // loop_pre_header
      _
    $region3: #{bottleneck_forward.1} parent=1 // loop_header
      %s16 = sphi 0, %s20
      %p17 = scmp.ge.s32.totalorder %s16, 4
      %s26 = sphi 0, %s28
      %s29 = sphi 0, %s26
      %s30 = sphi 0, %s29
      %s46 = sphi 0, %s30
      %s50 = sphi 0, %s50
      %s52 = sphi 0, %s50
      %s53 = sphi 0, %s52
      %s67 = sphi 0, %s53
      %s71 = sphi 0, %s71
      %s73 = sphi 0, %s71
      %s74 = sphi 0, %s73
      %s88 = sphi 0, %s74
      %s92 = sphi 0, %s92
      %s94 = sphi 0, %s92
      %s95 = sphi 0, %s94
      %s109 = sphi 0, %s95
      %s113 = sphi 0, %s113
      %s115 = sphi 0, %s113
      %s116 = sphi 0, %s115
      %s130 = sphi 0, %s116
      %s134 = sphi 0, %s134
      %s136 = sphi 0, %s134
      %s137 = sphi 0, %s136
      %s151 = sphi 0, %s137
      %s155 = sphi 0, %s155
      %s157 = sphi 0, %s155
      %s158 = sphi 0, %s157
      %s172 = sphi 0, %s158
      %s178 = sphi 0, %s180
      %s181 = sphi 0, %s178
      %s182 = sphi 0, %s181
      %s198 = sphi 0, %s182
    $region4: #{bottleneck_forward.1} parent=1 // loop_header_branch
      %19 = sbr.rel (%p17) target = $region8
    $region5: #{bottleneck_forward.1} parent=1 // loop_body
      %s21 = ssub.s32 %s16, 1
      %s22 = ssub.s32 %s16, 2
      %s23 = sadd.s32 %s16, 1
      %s24 = ssub.s32 %s16, %s23
      %p25 = scmp.eq.s32.totalorder %s24, 0
      %s27 = sadd.s32 %s26, 1
      %s28 = scalar_select %p25, %s26, %s27
      %p31 = pneg %p25
      %p32 = scmp.eq.s32.totalorder %s16, 1
      %p33 = por %p31, %p32
      %p34 = scmp.ne.s32.totalorder %s26, %s29
      %p35 = scmp.eq.s32.totalorder %s16, 0
      %p36 = por %p34, %p35
      %p37 = scmp.ne.s32.totalorder %s26, %s29
      %p38 = scmp.eq.s32.totalorder %s21, 1
      %p39 = por %p37, %p38
      %p40 = scmp.ne.s32.totalorder %s29, %s30
      %p41 = scmp.eq.s32.totalorder %s21, 0
      %p42 = por %p40, %p41
      %p43 = scmp.ne.s32.totalorder %s29, %s30
      %p44 = scmp.eq.s32.totalorder %s22, 1
      %p45 = por %p43, %p44
      %p47 = scmp.ne.s32.totalorder %s30, %s46
      %p48 = scmp.eq.s32.totalorder %s22, 0
      %p49 = por %p47, %p48
      %s51 = sadd.s32 %s50, 1
      %p54 = scmp.eq.s32.totalorder %s16, 1
      %p55 = scmp.ne.s32.totalorder %s50, %s52
      %p56 = scmp.eq.s32.totalorder %s16, 0
      %p57 = por %p55, %p56
      %p58 = scmp.ne.s32.totalorder %s50, %s52
      %p59 = scmp.eq.s32.totalorder %s21, 1
      %p60 = por %p58, %p59
      %p61 = scmp.ne.s32.totalorder %s52, %s53
      %p62 = scmp.eq.s32.totalorder %s21, 0
      %p63 = por %p61, %p62
      %p64 = scmp.ne.s32.totalorder %s52, %s53
      %p65 = scmp.eq.s32.totalorder %s22, 1
      %p66 = por %p64, %p65
      %p68 = scmp.ne.s32.totalorder %s53, %s67
      %p69 = scmp.eq.s32.totalorder %s22, 0
      %p70 = por %p68, %p69
      %s72 = sadd.s32 %s71, 1
      %p75 = scmp.eq.s32.totalorder %s16, 1
      %p76 = scmp.ne.s32.totalorder %s71, %s73
      %p77 = scmp.eq.s32.totalorder %s16, 0
      %p78 = por %p76, %p77
      %p79 = scmp.ne.s32.totalorder %s71, %s73
      %p80 = scmp.eq.s32.totalorder %s21, 1
      %p81 = por %p79, %p80
      %p82 = scmp.ne.s32.totalorder %s73, %s74
      %p83 = scmp.eq.s32.totalorder %s21, 0
      %p84 = por %p82, %p83
      %p85 = scmp.ne.s32.totalorder %s73, %s74
      %p86 = scmp.eq.s32.totalorder %s22, 1
      %p87 = por %p85, %p86
      %p89 = scmp.ne.s32.totalorder %s74, %s88
      %p90 = scmp.eq.s32.totalorder %s22, 0
      %p91 = por %p89, %p90
      %s93 = sadd.s32 %s92, 1
      %p96 = scmp.eq.s32.totalorder %s16, 1
      %p97 = scmp.ne.s32.totalorder %s92, %s94
      %p98 = scmp.eq.s32.totalorder %s16, 0
      %p99 = por %p97, %p98
      %p100 = scmp.ne.s32.totalorder %s92, %s94
      %p101 = scmp.eq.s32.totalorder %s21, 1
      %p102 = por %p100, %p101
      %p103 = scmp.ne.s32.totalorder %s94, %s95
      %p104 = scmp.eq.s32.totalorder %s21, 0
      %p105 = por %p103, %p104
      %p106 = scmp.ne.s32.totalorder %s94, %s95
      %p107 = scmp.eq.s32.totalorder %s22, 1
      %p108 = por %p106, %p107
      %p110 = scmp.ne.s32.totalorder %s95, %s109
      %p111 = scmp.eq.s32.totalorder %s22, 0
      %p112 = por %p110, %p111
      %s114 = sadd.s32 %s113, 1
      %p117 = scmp.eq.s32.totalorder %s16, 1
      %p118 = scmp.ne.s32.totalorder %s113, %s115
      %p119 = scmp.eq.s32.totalorder %s16, 0
      %p120 = por %p118, %p119
      %p121 = scmp.ne.s32.totalorder %s113, %s115
      %p122 = scmp.eq.s32.totalorder %s21, 1
      %p123 = por %p121, %p122
      %p124 = scmp.ne.s32.totalorder %s115, %s116
      %p125 = scmp.eq.s32.totalorder %s21, 0
      %p126 = por %p124, %p125
      %p127 = scmp.ne.s32.totalorder %s115, %s116
      %p128 = scmp.eq.s32.totalorder %s22, 1
      %p129 = por %p127, %p128
      %p131 = scmp.ne.s32.totalorder %s116, %s130
      %p132 = scmp.eq.s32.totalorder %s22, 0
      %p133 = por %p131, %p132
      %s135 = sadd.s32 %s134, 1
      %p138 = scmp.eq.s32.totalorder %s16, 1
      %p139 = scmp.ne.s32.totalorder %s134, %s136
      %p140 = scmp.eq.s32.totalorder %s16, 0
      %p141 = por %p139, %p140
      %p142 = scmp.ne.s32.totalorder %s134, %s136
      %p143 = scmp.eq.s32.totalorder %s21, 1
      %p144 = por %p142, %p143
      %p145 = scmp.ne.s32.totalorder %s136, %s137
      %p146 = scmp.eq.s32.totalorder %s21, 0
      %p147 = por %p145, %p146
      %p148 = scmp.ne.s32.totalorder %s136, %s137
      %p149 = scmp.eq.s32.totalorder %s22, 1
      %p150 = por %p148, %p149
      %p152 = scmp.ne.s32.totalorder %s137, %s151
      %p153 = scmp.eq.s32.totalorder %s22, 0
      %p154 = por %p152, %p153
      %s156 = sadd.s32 %s155, 1
      %p159 = scmp.eq.s32.totalorder %s16, 1
      %p160 = scmp.ne.s32.totalorder %s155, %s157
      %p161 = scmp.eq.s32.totalorder %s16, 0
      %p162 = por %p160, %p161
      %p163 = scmp.ne.s32.totalorder %s155, %s157
      %p164 = scmp.eq.s32.totalorder %s21, 1
      %p165 = por %p163, %p164
      %p166 = scmp.ne.s32.totalorder %s157, %s158
      %p167 = scmp.eq.s32.totalorder %s21, 0
      %p168 = por %p166, %p167
      %p169 = scmp.ne.s32.totalorder %s157, %s158
      %p170 = scmp.eq.s32.totalorder %s22, 1
      %p171 = por %p169, %p170
      %p173 = scmp.ne.s32.totalorder %s158, %s172
      %p174 = scmp.eq.s32.totalorder %s22, 0
      %p175 = por %p173, %p174
      %s176 = ssub.s32 %s16, %s23
      %p177 = scmp.eq.s32.totalorder %s176, 0
      %s179 = sadd.s32 %s178, 1
      %s180 = scalar_select %p177, %s178, %s179
      %p183 = pneg %p177
      %p184 = scmp.eq.s32.totalorder %s16, 1
      %p185 = por %p183, %p184
      %p186 = scmp.ne.s32.totalorder %s178, %s181
      %p187 = scmp.eq.s32.totalorder %s16, 0
      %p188 = por %p186, %p187
      %p189 = scmp.ne.s32.totalorder %s178, %s181
      %p190 = scmp.eq.s32.totalorder %s21, 1
      %p191 = por %p189, %p190
      %p192 = scmp.ne.s32.totalorder %s181, %s182
      %p193 = scmp.eq.s32.totalorder %s21, 0
      %p194 = por %p192, %p193
      %p195 = scmp.ne.s32.totalorder %s181, %s182
      %p196 = scmp.eq.s32.totalorder %s22, 1
      %p197 = por %p195, %p196
      %p199 = scmp.ne.s32.totalorder %s182, %s198
      %p200 = scmp.eq.s32.totalorder %s22, 0
      %p201 = por %p199, %p200
      %p202 = scmp.le.s32.totalorder 1, %s16
      %p203 = scmp.lt.s32.totalorder %s16, 3
      %p204 = pnand %p202, %p203
      %p205 = pneg %p204
      // Predicated region
      $region9: #{bottleneck_forward.1} parent=5 // pred_check
        _
      $region10: #{bottleneck_forward.1} parent=5 // pred_check_branch
        %207 = sbr.rel (%p204) target = $region12
      $region11: #{bottleneck_forward.1} parent=5 // pred_region
        %s208 = ssub.s32 %s16, 1
        // Predicated region
        $region13: #{bottleneck_forward.1} parent=11 // pred_check
          %p209 = pneg %p63
        $region14: #{bottleneck_forward.1} parent=11 // pred_check_branch
          %211 = sbr.rel (%p209) target = $region16
        $region15: #{bottleneck_forward.1} parent=11 // pred_region
          _
        $region16: #{bottleneck_forward.1} parent=11 // pred_fallthru
          _
        // Predicated region
        $region17: #{bottleneck_forward.1} parent=11 // pred_check
          %p212 = pneg %p84
        $region18: #{bottleneck_forward.1} parent=11 // pred_check_branch
          %214 = sbr.rel (%p212) target = $region20
        $region19: #{bottleneck_forward.1} parent=11 // pred_region
          _
        $region20: #{bottleneck_forward.1} parent=11 // pred_fallthru
          _
        // Predicated region
        $region21: #{bottleneck_forward.1} parent=11 // pred_check
          %p215 = pneg %p105
        $region22: #{bottleneck_forward.1} parent=11 // pred_check_branch
          %217 = sbr.rel (%p215) target = $region24
        $region23: #{bottleneck_forward.1} parent=11 // pred_region
          _
        $region24: #{bottleneck_forward.1} parent=11 // pred_fallthru
          _
        // Predicated region
        $region25: #{bottleneck_forward.1} parent=11 // pred_check
          %p218 = pneg %p126
        $region26: #{bottleneck_forward.1} parent=11 // pred_check_branch
          %220 = sbr.rel (%p218) target = $region28
        $region27: #{bottleneck_forward.1} parent=11 // pred_region
          _
        $region28: #{bottleneck_forward.1} parent=11 // pred_fallthru
          _
        // Predicated region
        $region29: #{bottleneck_forward.1} parent=11 // pred_check
          %p221 = pneg %p147
        $region30: #{bottleneck_forward.1} parent=11 // pred_check_branch
          %223 = sbr.rel (%p221) target = $region32
        $region31: #{bottleneck_forward.1} parent=11 // pred_region
          _
        $region32: #{bottleneck_forward.1} parent=11 // pred_fallthru
          _
        // Predicated region
        $region33: #{bottleneck_forward.1} parent=11 // pred_check
          %p224 = pneg %p168
        $region34: #{bottleneck_forward.1} parent=11 // pred_check_branch
          %226 = sbr.rel (%p224) target = $region36
        $region35: #{bottleneck_forward.1} parent=11 // pred_region
          _
        $region36: #{bottleneck_forward.1} parent=11 // pred_fallthru
          _
      $region12: #{bottleneck_forward.1} parent=5 // pred_fallthru
        _
      %p227 = scmp.lt.s32.totalorder %s16, 2
      // Predicated region
      $region37: #{bottleneck_forward.1} parent=5 // pred_check
        %p228 = pneg %p227
      $region38: #{bottleneck_forward.1} parent=5 // pred_check_branch
        %230 = sbr.rel (%p228) target = $region40
      $region39: #{bottleneck_forward.1} parent=5 // pred_region
        // Predicated region
        $region41: #{bottleneck_forward.1} parent=39 // pred_check
          %p231 = pneg %p36
        $region42: #{bottleneck_forward.1} parent=39 // pred_check_branch
          %233 = sbr.rel (%p231) target = $region44
        $region43: #{bottleneck_forward.1} parent=39 // pred_region
          %p234 = scmp.lt.s32.totalorder %s16, 1
          %s235 = scalar_select %p234, %s16, 1
          %s236 = smul.addr %s235, 32
          %s237 = smul.addr %s236, 8
          %s238 = scalar_lea.vmem %s0, %s237
        $region44: #{bottleneck_forward.1} parent=39 // pred_fallthru
          _
      $region40: #{bottleneck_forward.1} parent=5 // pred_fallthru
        _
      %p239 = scmp.le.s32.totalorder 1, %s16
      %p240 = scmp.lt.s32.totalorder %s16, 3
      %p241 = pnand %p239, %p240
      %p242 = pneg %p241
      // Predicated region
      $region45: #{bottleneck_forward.1} parent=5 // pred_check
        _
      $region46: #{bottleneck_forward.1} parent=5 // pred_check_branch
        %244 = sbr.rel (%p241) target = $region48
      $region47: #{bottleneck_forward.1} parent=5 // pred_region
        %s245 = ssub.s32 %s16, 1
        %p246 = scmp.lt.s32.totalorder %s21, 1
        %s247 = scalar_select %p246, %s21, 1
        %s248 = smul.addr %s247, 32
        %s249 = smul.addr %s248, 8
        %s250 = scalar_lea.vmem %s0, %s249
        %p251 = pneg %p42
        %p252 = pneg %p39
        %p253 = pneg %p63
        %p254 = pneg %p60
        %p255 = pneg %p84
        %p256 = pneg %p81
        %p257 = pneg %p105
        %p258 = pneg %p102
        %p259 = pneg %p126
        %p260 = pneg %p123
        %p261 = pneg %p147
        %p262 = pneg %p144
        %p263 = pneg %p168
        %p264 = pneg %p165
        %p265 = pneg %p194
        %p266 = pneg %p191
        %s267 = sand.u32 %s181, 1
        %s268 = scalar_lea.sflag [#allocation3], %s267
        %s269 = sand.u32 %s181, 1
        %s270 = smul.addr %s269, 256
        %s271 = scalar_lea.vmem [#allocation2], %s270
        %p272 = scmp.lt.s32.totalorder %s21, 1
        %s273 = scalar_select %p272, %s21, 1
        %s274 = smul.addr %s273, 32
        %s275 = smul.addr %s274, 8
        %s276 = scalar_lea.vmem %s0, %s275
        %v278 = vld [vmem:[%s276] sm:$0xff]
        %v279 = vld [vmem:[%s276 + $0x8] sm:$0xff]
        %v280 = vld [vmem:[%s276 + $0x10] sm:$0xff]
        %v281 = vld [vmem:[%s276 + $0x18] sm:$0xff]
        %v282 = vld [vmem:[%s276 + $0x20] sm:$0xff]
        %v283 = vld [vmem:[%s276 + $0x28] sm:$0xff]
        %v284 = vld [vmem:[%s276 + $0x30] sm:$0xff]
        %v285 = vld [vmem:[%s276 + $0x38] sm:$0xff]
        %v286 = vld [vmem:[%s276 + $0x40] sm:$0xff]
        %v287 = vld [vmem:[%s276 + $0x48] sm:$0xff]
        %v288 = vld [vmem:[%s276 + $0x50] sm:$0xff]
        %v289 = vld [vmem:[%s276 + $0x58] sm:$0xff]
        %v290 = vld [vmem:[%s276 + $0x60] sm:$0xff]
        %v291 = vld [vmem:[%s276 + $0x68] sm:$0xff]
        %v292 = vld [vmem:[%s276 + $0x70] sm:$0xff]
        %v293 = vld [vmem:[%s276 + $0x78] sm:$0xff]
        %v294 = vld [vmem:[%s276 + $0x80] sm:$0xff]
        %v295 = vld [vmem:[%s276 + $0x88] sm:$0xff]
        %v296 = vld [vmem:[%s276 + $0x90] sm:$0xff]
        %v297 = vld [vmem:[%s276 + $0x98] sm:$0xff]
        %v298 = vld [vmem:[%s276 + $0xa0] sm:$0xff]
        %v299 = vld [vmem:[%s276 + $0xa8] sm:$0xff]
        %v300 = vld [vmem:[%s276 + $0xb0] sm:$0xff]
        %v301 = vld [vmem:[%s276 + $0xb8] sm:$0xff]
        %v302 = vld [vmem:[%s276 + $0xc0] sm:$0xff]
        %v303 = vld [vmem:[%s276 + $0xc8] sm:$0xff]
        %v304 = vld [vmem:[%s276 + $0xd0] sm:$0xff]
        %v305 = vld [vmem:[%s276 + $0xd8] sm:$0xff]
        %v306 = vld [vmem:[%s276 + $0xe0] sm:$0xff]
        %v307 = vld [vmem:[%s276 + $0xe8] sm:$0xff]
        %v308 = vld [vmem:[%s276 + $0xf0] sm:$0xff]
        %v309 = vld [vmem:[%s276 + $0xf8] sm:$0xff]
        %v310 = vpack.c.bf16 %v279, %v278
        %v311 = vpack.c.bf16 %v281, %v280
        %v312 = vpack.c.bf16 %v283, %v282
        %v313 = vpack.c.bf16 %v285, %v284
        %v314 = vpack.c.bf16 %v287, %v286
        %v315 = vpack.c.bf16 %v289, %v288
        %v316 = vpack.c.bf16 %v291, %v290
        %v317 = vpack.c.bf16 %v293, %v292
        %v318 = vpack.c.bf16 %v295, %v294
        %v319 = vpack.c.bf16 %v297, %v296
        %v320 = vpack.c.bf16 %v299, %v298
        %v321 = vpack.c.bf16 %v301, %v300
        %v322 = vpack.c.bf16 %v303, %v302
        %v323 = vpack.c.bf16 %v305, %v304
        %v324 = vpack.c.bf16 %v307, %v306
        %v325 = vpack.c.bf16 %v309, %v308
        %v326 = vld [vmem:[%s1] sm:$0xf]
        %v327 = vld [vmem:[%s1 + $0x4] sm:$0xf]
        %v328 = vld [vmem:[%s1 + $0x8] sm:$0xf]
        %v329 = vld [vmem:[%s1 + $0xc] sm:$0xf]
        %v330 = vld [vmem:[%s1 + $0x10] sm:$0xf]
        %v331 = vld [vmem:[%s1 + $0x14] sm:$0xf]
        %v332 = vld [vmem:[%s1 + $0x18] sm:$0xf]
        %v333 = vld [vmem:[%s1 + $0x1c] sm:$0xf]
        %v334 = vld [vmem:[%s1 + $0x20] sm:$0xf]
        %v335 = vld [vmem:[%s1 + $0x24] sm:$0xf]
        %v336 = vld [vmem:[%s1 + $0x28] sm:$0xf]
        %v337 = vld [vmem:[%s1 + $0x2c] sm:$0xf]
        %v338 = vld [vmem:[%s1 + $0x30] sm:$0xf]
        %v339 = vld [vmem:[%s1 + $0x34] sm:$0xf]
        %v340 = vld [vmem:[%s1 + $0x38] sm:$0xf]
        %v341 = vld [vmem:[%s1 + $0x3c] sm:$0xf]
        %v342 = vld [vmem:[%s4] sm:$0x1]
        %v344 = vperm.slane %v342, 0
        %v362 = vunpack.c.l.b16 %v326
        %v363 = vunpack.c.l.b16 %v327
        %v364 = vunpack.c.l.b16 %v328
        %v365 = vunpack.c.l.b16 %v329
        %v366 = vunpack.c.l.b16 %v330
        %v367 = vunpack.c.l.b16 %v331
        %v368 = vunpack.c.l.b16 %v332
        %v369 = vunpack.c.l.b16 %v333
        %v370 = vunpack.c.l.b16 %v334
        %v371 = vunpack.c.l.b16 %v335
        %v372 = vunpack.c.l.b16 %v336
        %v373 = vunpack.c.l.b16 %v337
        %v374 = vunpack.c.l.b16 %v338
        %v375 = vunpack.c.l.b16 %v339
        %v376 = vunpack.c.l.b16 %v340
        %v377 = vunpack.c.l.b16 %v341
        %v378 = vpack.c.b16 %v363, %v362
        %v379 = vpack.c.b16 %v365, %v364
        %v380 = vpack.c.b16 %v367, %v366
        %v381 = vpack.c.b16 %v369, %v368
        %v382 = vpack.c.b16 %v371, %v370
        %v383 = vpack.c.b16 %v373, %v372
        %v384 = vpack.c.b16 %v375, %v374
        %v385 = vpack.c.b16 %v377, %v376
        %394 = vmatpush.bf16.msra.mxu0 %v385
        %395 = vmatpush.bf16.msra.mxu0 %v384
        %396 = vmatpush.bf16.msra.mxu0 %v383
        %397 = vmatpush.bf16.msra.mxu0 %v382
        %398 = vmatpush.bf16.msra.mxu0 %v381
        %399 = vmatpush.bf16.msra.mxu0 %v380
        %400 = vmatpush.bf16.msra.mxu0 %v379
        %401 = vmatpush.bf16.msra.mxu0 %v378
        %402 = vmatmul.bf16.gmra.mxu0 %v310
        %v403 = vpop.f32.mrf.mxu0
        %v404 = vadd.f32 %v344, %v403
        %v405 = vpop.f32.mrf.mxu0
        %v406 = vadd.f32 %v344, %v405
        %407 = vmatmul.bf16.gmra.mxu0 %v311
        %v408 = vpop.f32.mrf.mxu0
        %v409 = vadd.f32 %v344, %v408
        %v410 = vpop.f32.mrf.mxu0
        %v411 = vadd.f32 %v344, %v410
        %412 = vmatmul.bf16.gmra.mxu0 %v312
        %v413 = vpop.f32.mrf.mxu0
        %v414 = vadd.f32 %v344, %v413
        %v415 = vpop.f32.mrf.mxu0
        %v416 = vadd.f32 %v344, %v415
        %417 = vmatmul.bf16.gmra.mxu0 %v313
        %v418 = vpop.f32.mrf.mxu0
        %v419 = vadd.f32 %v344, %v418
        %v420 = vpop.f32.mrf.mxu0
        %v421 = vadd.f32 %v344, %v420
        %422 = vmatmul.bf16.gmra.mxu0 %v314
        %v423 = vpop.f32.mrf.mxu0
        %v424 = vadd.f32 %v344, %v423
        %v425 = vpop.f32.mrf.mxu0
        %v426 = vadd.f32 %v344, %v425
        %427 = vmatmul.bf16.gmra.mxu0 %v315
        %v428 = vpop.f32.mrf.mxu0
        %v429 = vadd.f32 %v344, %v428
        %v430 = vpop.f32.mrf.mxu0
        %v431 = vadd.f32 %v344, %v430
        %432 = vmatmul.bf16.gmra.mxu0 %v316
        %v433 = vpop.f32.mrf.mxu0
        %v434 = vadd.f32 %v344, %v433
        %v435 = vpop.f32.mrf.mxu0
        %v436 = vadd.f32 %v344, %v435
        %437 = vmatmul.bf16.gmra.mxu0 %v317
        %v438 = vpop.f32.mrf.mxu0
        %v439 = vadd.f32 %v344, %v438
        %v440 = vpop.f32.mrf.mxu0
        %v441 = vadd.f32 %v344, %v440
        %442 = vmatmul.bf16.gmra.mxu0 %v318
        %v443 = vpop.f32.mrf.mxu0
        %v444 = vadd.f32 %v344, %v443
        %v445 = vpop.f32.mrf.mxu0
        %v446 = vadd.f32 %v344, %v445
        %447 = vmatmul.bf16.gmra.mxu0 %v319
        %v448 = vpop.f32.mrf.mxu0
        %v449 = vadd.f32 %v344, %v448
        %v450 = vpop.f32.mrf.mxu0
        %v451 = vadd.f32 %v344, %v450
        %452 = vmatmul.bf16.gmra.mxu0 %v320
        %v453 = vpop.f32.mrf.mxu0
        %v454 = vadd.f32 %v344, %v453
        %v455 = vpop.f32.mrf.mxu0
        %v456 = vadd.f32 %v344, %v455
        %457 = vmatmul.bf16.gmra.mxu0 %v321
        %v458 = vpop.f32.mrf.mxu0
        %v459 = vadd.f32 %v344, %v458
        %v460 = vpop.f32.mrf.mxu0
        %v461 = vadd.f32 %v344, %v460
        %462 = vmatmul.bf16.gmra.mxu0 %v322
        %v463 = vpop.f32.mrf.mxu0
        %v464 = vadd.f32 %v344, %v463
        %v465 = vpop.f32.mrf.mxu0
        %v466 = vadd.f32 %v344, %v465
        %467 = vmatmul.bf16.gmra.mxu0 %v323
        %v468 = vpop.f32.mrf.mxu0
        %v469 = vadd.f32 %v344, %v468
        %v470 = vpop.f32.mrf.mxu0
        %v471 = vadd.f32 %v344, %v470
        %472 = vmatmul.bf16.gmra.mxu0 %v324
        %v473 = vpop.f32.mrf.mxu0
        %v474 = vadd.f32 %v344, %v473
        %v475 = vpop.f32.mrf.mxu0
        %v476 = vadd.f32 %v344, %v475
        %477 = vmatmul.bf16.gmra.mxu0 %v325
        %v478 = vpop.f32.mrf.mxu0
        %v479 = vadd.f32 %v344, %v478
        %v480 = vpop.f32.mrf.mxu0
        %v481 = vadd.f32 %v344, %v480
        %482 = vdwg.mxu0
        %v483 = vmax.f32 %v404, 0.0
        %v484 = vmax.f32 %v406, 0.0
        %v485 = vmax.f32 %v409, 0.0
        %v486 = vmax.f32 %v411, 0.0
        %v487 = vmax.f32 %v414, 0.0
        %v488 = vmax.f32 %v416, 0.0
        %v489 = vmax.f32 %v419, 0.0
        %v490 = vmax.f32 %v421, 0.0
        %v491 = vmax.f32 %v424, 0.0
        %v492 = vmax.f32 %v426, 0.0
        %v493 = vmax.f32 %v429, 0.0
        %v494 = vmax.f32 %v431, 0.0
        %v495 = vmax.f32 %v434, 0.0
        %v496 = vmax.f32 %v436, 0.0
        %v497 = vmax.f32 %v439, 0.0
        %v498 = vmax.f32 %v441, 0.0
        %v499 = vmax.f32 %v444, 0.0
        %v500 = vmax.f32 %v446, 0.0
        %v501 = vmax.f32 %v449, 0.0
        %v502 = vmax.f32 %v451, 0.0
        %v503 = vmax.f32 %v454, 0.0
        %v504 = vmax.f32 %v456, 0.0
        %v505 = vmax.f32 %v459, 0.0
        %v506 = vmax.f32 %v461, 0.0
        %v507 = vmax.f32 %v464, 0.0
        %v508 = vmax.f32 %v466, 0.0
        %v509 = vmax.f32 %v469, 0.0
        %v510 = vmax.f32 %v471, 0.0
        %v511 = vmax.f32 %v474, 0.0
        %v512 = vmax.f32 %v476, 0.0
        %v513 = vmax.f32 %v479, 0.0
        %v514 = vmax.f32 %v481, 0.0
        %v515 = vlaneseq
        %v516 = vshrl.u32 %v515, 7
        %v517 = vadd.s32 %v516, 8
        %vm518 = vcmp.gt.s32.totalorder %v516, 0
        %vm519 = vcmp.gt.s32.totalorder %v517, 0
        %v520 = vrot.slane %v483, 7
        %v521 = vrot.slane %v485, 7
        %v522 = vrot.slane %v487, 7
        %v523 = vrot.slane %v489, 7
        %v524 = vrot.slane %v491, 7
        %v525 = vrot.slane %v493, 7
        %v526 = vrot.slane %v495, 7
        %v527 = vrot.slane %v497, 7
        %v528 = vrot.slane %v499, 7
        %v529 = vrot.slane %v501, 7
        %v530 = vrot.slane %v503, 7
        %v531 = vrot.slane %v505, 7
        %v532 = vrot.slane %v507, 7
        %v533 = vrot.slane %v509, 7
        %v534 = vrot.slane %v511, 7
        %v535 = vrot.slane %v513, 7
        %v536 = vrot.slane %v484, 7
        %v537 = vrot.slane %v486, 7
        %v538 = vrot.slane %v488, 7
        %v539 = vrot.slane %v490, 7
        %v540 = vrot.slane %v492, 7
        %v541 = vrot.slane %v494, 7
        %v542 = vrot.slane %v496, 7
        %v543 = vrot.slane %v498, 7
        %v544 = vrot.slane %v500, 7
        %v545 = vrot.slane %v502, 7
        %v546 = vrot.slane %v504, 7
        %v547 = vrot.slane %v506, 7
        %v548 = vrot.slane %v508, 7
        %v549 = vrot.slane %v510, 7
        %v550 = vrot.slane %v512, 7
        %v551 = vrot.slane %v514, 7
        %vm552 = vcmp.lt.s32.totalorder %v516, 1
        %v553 = vsel %vm552, %v520, %v536
        %v554 = vsel %vm552, %v521, %v537
        %v555 = vsel %vm552, %v522, %v538
        %v556 = vsel %vm552, %v523, %v539
        %v557 = vsel %vm552, %v524, %v540
        %v558 = vsel %vm552, %v525, %v541
        %v559 = vsel %vm552, %v526, %v542
        %v560 = vsel %vm552, %v527, %v543
        %v561 = vsel %vm552, %v528, %v544
        %v562 = vsel %vm552, %v529, %v545
        %v563 = vsel %vm552, %v530, %v546
        %v564 = vsel %vm552, %v531, %v547
        %v565 = vsel %vm552, %v532, %v548
        %v566 = vsel %vm552, %v533, %v549
        %v567 = vsel %vm552, %v534, %v550
        %v568 = vsel %vm552, %v535, %v551
        %v569 = vsel %vm552, %v536, %v520
        %v570 = vsel %vm552, %v537, %v521
        %v571 = vsel %vm552, %v538, %v522
        %v572 = vsel %vm552, %v539, %v523
        %v573 = vsel %vm552, %v540, %v524
        %v574 = vsel %vm552, %v541, %v525
        %v575 = vsel %vm552, %v542, %v526
        %v576 = vsel %vm552, %v543, %v527
        %v577 = vsel %vm552, %v544, %v528
        %v578 = vsel %vm552, %v545, %v529
        %v579 = vsel %vm552, %v546, %v530
        %v580 = vsel %vm552, %v547, %v531
        %v581 = vsel %vm552, %v548, %v532
        %v582 = vsel %vm552, %v549, %v533
        %v583 = vsel %vm552, %v550, %v534
        %v584 = vsel %vm552, %v551, %v535
        %v585 = vsel %vm518, 1, 0
        %v586 = vsel %vm519, 1, 0
        %vm587 = vcmp.eq.s32.totalorder %v585, 1
        %vm588 = vcmp.eq.s32.totalorder %v586, 1
        %v589 = vsel %vm587, %v569, 0.0
        %v590 = vsel %vm588, %v553, 0.0
        %v591 = vsel %vm587, %v570, 0.0
        %v592 = vsel %vm588, %v554, 0.0
        %v593 = vsel %vm587, %v571, 0.0
        %v594 = vsel %vm588, %v555, 0.0
        %v595 = vsel %vm587, %v572, 0.0
        %v596 = vsel %vm588, %v556, 0.0
        %v597 = vsel %vm587, %v573, 0.0
        %v598 = vsel %vm588, %v557, 0.0
        %v599 = vsel %vm587, %v574, 0.0
        %v600 = vsel %vm588, %v558, 0.0
        %v601 = vsel %vm587, %v575, 0.0
        %v602 = vsel %vm588, %v559, 0.0
        %v603 = vsel %vm587, %v576, 0.0
        %v604 = vsel %vm588, %v560, 0.0
        %v605 = vsel %vm587, %v577, 0.0
        %v606 = vsel %vm588, %v561, 0.0
        %v607 = vsel %vm587, %v578, 0.0
        %v608 = vsel %vm588, %v562, 0.0
        %v609 = vsel %vm587, %v579, 0.0
        %v610 = vsel %vm588, %v563, 0.0
        %v611 = vsel %vm587, %v580, 0.0
        %v612 = vsel %vm588, %v564, 0.0
        %v613 = vsel %vm587, %v581, 0.0
        %v614 = vsel %vm588, %v565, 0.0
        %v615 = vsel %vm587, %v582, 0.0
        %v616 = vsel %vm588, %v566, 0.0
        %v617 = vsel %vm587, %v583, 0.0
        %v618 = vsel %vm588, %v567, 0.0
        %v619 = vsel %vm587, %v584, 0.0
        %v620 = vsel %vm588, %v568, 0.0
        %vm621 = vcmp.lt.s32.totalorder %v516, 15
        %vm622 = vcmp.lt.s32.totalorder %v517, 15
        %v623 = vrot.slane %v483, 1
        %v624 = vrot.slane %v485, 1
        %v625 = vrot.slane %v487, 1
        %v626 = vrot.slane %v489, 1
        %v627 = vrot.slane %v491, 1
        %v628 = vrot.slane %v493, 1
        %v629 = vrot.slane %v495, 1
        %v630 = vrot.slane %v497, 1
        %v631 = vrot.slane %v499, 1
        %v632 = vrot.slane %v501, 1
        %v633 = vrot.slane %v503, 1
        %v634 = vrot.slane %v505, 1
        %v635 = vrot.slane %v507, 1
        %v636 = vrot.slane %v509, 1
        %v637 = vrot.slane %v511, 1
        %v638 = vrot.slane %v513, 1
        %v639 = vrot.slane %v484, 1
        %v640 = vrot.slane %v486, 1
        %v641 = vrot.slane %v488, 1
        %v642 = vrot.slane %v490, 1
        %v643 = vrot.slane %v492, 1
        %v644 = vrot.slane %v494, 1
        %v645 = vrot.slane %v496, 1
        %v646 = vrot.slane %v498, 1
        %v647 = vrot.slane %v500, 1
        %v648 = vrot.slane %v502, 1
        %v649 = vrot.slane %v504, 1
        %v650 = vrot.slane %v506, 1
        %v651 = vrot.slane %v508, 1
        %v652 = vrot.slane %v510, 1
        %v653 = vrot.slane %v512, 1
        %v654 = vrot.slane %v514, 1
        %vm655 = vcmp.lt.s32.totalorder %v516, 7
        %v656 = vsel %vm655, %v623, %v639
        %v657 = vsel %vm655, %v624, %v640
        %v658 = vsel %vm655, %v625, %v641
        %v659 = vsel %vm655, %v626, %v642
        %v660 = vsel %vm655, %v627, %v643
        %v661 = vsel %vm655, %v628, %v644
        %v662 = vsel %vm655, %v629, %v645
        %v663 = vsel %vm655, %v630, %v646
        %v664 = vsel %vm655, %v631, %v647
        %v665 = vsel %vm655, %v632, %v648
        %v666 = vsel %vm655, %v633, %v649
        %v667 = vsel %vm655, %v634, %v650
        %v668 = vsel %vm655, %v635, %v651
        %v669 = vsel %vm655, %v636, %v652
        %v670 = vsel %vm655, %v637, %v653
        %v671 = vsel %vm655, %v638, %v654
        %v672 = vsel %vm655, %v639, %v623
        %v673 = vsel %vm655, %v640, %v624
        %v674 = vsel %vm655, %v641, %v625
        %v675 = vsel %vm655, %v642, %v626
        %v676 = vsel %vm655, %v643, %v627
        %v677 = vsel %vm655, %v644, %v628
        %v678 = vsel %vm655, %v645, %v629
        %v679 = vsel %vm655, %v646, %v630
        %v680 = vsel %vm655, %v647, %v631
        %v681 = vsel %vm655, %v648, %v632
        %v682 = vsel %vm655, %v649, %v633
        %v683 = vsel %vm655, %v650, %v634
        %v684 = vsel %vm655, %v651, %v635
        %v685 = vsel %vm655, %v652, %v636
        %v686 = vsel %vm655, %v653, %v637
        %v687 = vsel %vm655, %v654, %v638
        %v688 = vsel %vm621, 1, 0
        %v689 = vsel %vm622, 1, 0
        %vm690 = vcmp.eq.s32.totalorder %v688, 1
        %vm691 = vcmp.eq.s32.totalorder %v689, 1
        %v692 = vsel %vm690, %v656, 0.0
        %v693 = vsel %vm691, %v672, 0.0
        %v694 = vsel %vm690, %v657, 0.0
        %v695 = vsel %vm691, %v673, 0.0
        %v696 = vsel %vm690, %v658, 0.0
        %v697 = vsel %vm691, %v674, 0.0
        %v698 = vsel %vm690, %v659, 0.0
        %v699 = vsel %vm691, %v675, 0.0
        %v700 = vsel %vm690, %v660, 0.0
        %v701 = vsel %vm691, %v676, 0.0
        %v702 = vsel %vm690, %v661, 0.0
        %v703 = vsel %vm691, %v677, 0.0
        %v704 = vsel %vm690, %v662, 0.0
        %v705 = vsel %vm691, %v678, 0.0
        %v706 = vsel %vm690, %v663, 0.0
        %v707 = vsel %vm691, %v679, 0.0
        %v708 = vsel %vm690, %v664, 0.0
        %v709 = vsel %vm691, %v680, 0.0
        %v710 = vsel %vm690, %v665, 0.0
        %v711 = vsel %vm691, %v681, 0.0
        %v712 = vsel %vm690, %v666, 0.0
        %v713 = vsel %vm691, %v682, 0.0
        %v714 = vsel %vm690, %v667, 0.0
        %v715 = vsel %vm691, %v683, 0.0
        %v716 = vsel %vm690, %v668, 0.0
        %v717 = vsel %vm691, %v684, 0.0
        %v718 = vsel %vm690, %v669, 0.0
        %v719 = vsel %vm691, %v685, 0.0
        %v720 = vsel %vm690, %v670, 0.0
        %v721 = vsel %vm691, %v686, 0.0
        %v722 = vsel %vm690, %v671, 0.0
        %v723 = vsel %vm691, %v687, 0.0
        %756 = vrot.lane.b32.xlu0 %v483, 32
        %v757 = vpop.permute.xlu0 %756
        %758 = vrot.lane.b32.xlu0 %v484, 32
        %v759 = vpop.permute.xlu0 %758
        %760 = vrot.lane.b32.xlu0 %v485, 32
        %v761 = vpop.permute.xlu0 %760
        %762 = vrot.lane.b32.xlu0 %v486, 32
        %v763 = vpop.permute.xlu0 %762
        %764 = vrot.lane.b32.xlu0 %v487, 32
        %v765 = vpop.permute.xlu0 %764
        %766 = vrot.lane.b32.xlu0 %v488, 32
        %v767 = vpop.permute.xlu0 %766
        %768 = vrot.lane.b32.xlu0 %v489, 32
        %v769 = vpop.permute.xlu0 %768
        %770 = vrot.lane.b32.xlu0 %v490, 32
        %v771 = vpop.permute.xlu0 %770
        %772 = vrot.lane.b32.xlu0 %v491, 32
        %v773 = vpop.permute.xlu0 %772
        %774 = vrot.lane.b32.xlu0 %v492, 32
        %v775 = vpop.permute.xlu0 %774
        %776 = vrot.lane.b32.xlu0 %v493, 32
        %v777 = vpop.permute.xlu0 %776
        %778 = vrot.lane.b32.xlu0 %v494, 32
        %v779 = vpop.permute.xlu0 %778
        %780 = vrot.lane.b32.xlu0 %v495, 32
        %v781 = vpop.permute.xlu0 %780
        %782 = vrot.lane.b32.xlu0 %v496, 32
        %v783 = vpop.permute.xlu0 %782
        %784 = vrot.lane.b32.xlu0 %v497, 32
        %v785 = vpop.permute.xlu0 %784
        %786 = vrot.lane.b32.xlu0 %v498, 32
        %v787 = vpop.permute.xlu0 %786
        %788 = vrot.lane.b32.xlu0 %v499, 32
        %v789 = vpop.permute.xlu0 %788
        %790 = vrot.lane.b32.xlu0 %v500, 32
        %v791 = vpop.permute.xlu0 %790
        %792 = vrot.lane.b32.xlu0 %v501, 32
        %v793 = vpop.permute.xlu0 %792
        %794 = vrot.lane.b32.xlu0 %v502, 32
        %v795 = vpop.permute.xlu0 %794
        %796 = vrot.lane.b32.xlu0 %v503, 32
        %v797 = vpop.permute.xlu0 %796
        %798 = vrot.lane.b32.xlu0 %v504, 32
        %v799 = vpop.permute.xlu0 %798
        %800 = vrot.lane.b32.xlu0 %v505, 32
        %v801 = vpop.permute.xlu0 %800
        %802 = vrot.lane.b32.xlu0 %v506, 32
        %v803 = vpop.permute.xlu0 %802
        %804 = vrot.lane.b32.xlu0 %v507, 32
        %v805 = vpop.permute.xlu0 %804
        %806 = vrot.lane.b32.xlu0 %v508, 32
        %v807 = vpop.permute.xlu0 %806
        %808 = vrot.lane.b32.xlu0 %v509, 32
        %v809 = vpop.permute.xlu0 %808
        %810 = vrot.lane.b32.xlu0 %v510, 32
        %v811 = vpop.permute.xlu0 %810
        %812 = vrot.lane.b32.xlu0 %v511, 32
        %v813 = vpop.permute.xlu0 %812
        %814 = vrot.lane.b32.xlu0 %v512, 32
        %v815 = vpop.permute.xlu0 %814
        %816 = vrot.lane.b32.xlu0 %v513, 32
        %v817 = vpop.permute.xlu0 %816
        %818 = vrot.lane.b32.xlu0 %v514, 32
        %v819 = vpop.permute.xlu0 %818
        %884 = vrot.lane.b32.xlu0 %v692, 64
        %v885 = vpop.permute.xlu0 %884
        %886 = vrot.lane.b32.xlu0 %v693, 64
        %v887 = vpop.permute.xlu0 %886
        %888 = vrot.lane.b32.xlu0 %v694, 64
        %v889 = vpop.permute.xlu0 %888
        %890 = vrot.lane.b32.xlu0 %v695, 64
        %v891 = vpop.permute.xlu0 %890
        %892 = vrot.lane.b32.xlu0 %v696, 64
        %v893 = vpop.permute.xlu0 %892
        %894 = vrot.lane.b32.xlu0 %v697, 64
        %v895 = vpop.permute.xlu0 %894
        %896 = vrot.lane.b32.xlu0 %v698, 64
        %v897 = vpop.permute.xlu0 %896
        %898 = vrot.lane.b32.xlu0 %v699, 64
        %v899 = vpop.permute.xlu0 %898
        %900 = vrot.lane.b32.xlu0 %v700, 64
        %v901 = vpop.permute.xlu0 %900
        %902 = vrot.lane.b32.xlu0 %v701, 64
        %v903 = vpop.permute.xlu0 %902
        %904 = vrot.lane.b32.xlu0 %v702, 64
        %v905 = vpop.permute.xlu0 %904
        %906 = vrot.lane.b32.xlu0 %v703, 64
        %v907 = vpop.permute.xlu0 %906
        %908 = vrot.lane.b32.xlu0 %v704, 64
        %v909 = vpop.permute.xlu0 %908
        %910 = vrot.lane.b32.xlu0 %v705, 64
        %v911 = vpop.permute.xlu0 %910
        %912 = vrot.lane.b32.xlu0 %v706, 64
        %v913 = vpop.permute.xlu0 %912
        %914 = vrot.lane.b32.xlu0 %v707, 64
        %v915 = vpop.permute.xlu0 %914
        %916 = vrot.lane.b32.xlu0 %v708, 64
        %v917 = vpop.permute.xlu0 %916
        %918 = vrot.lane.b32.xlu0 %v709, 64
        %v919 = vpop.permute.xlu0 %918
        %920 = vrot.lane.b32.xlu0 %v710, 64
        %v921 = vpop.permute.xlu0 %920
        %922 = vrot.lane.b32.xlu0 %v711, 64
        %v923 = vpop.permute.xlu0 %922
        %924 = vrot.lane.b32.xlu0 %v712, 64
        %v925 = vpop.permute.xlu0 %924
        %926 = vrot.lane.b32.xlu0 %v713, 64
        %v927 = vpop.permute.xlu0 %926
        %928 = vrot.lane.b32.xlu0 %v714, 64
        %v929 = vpop.permute.xlu0 %928
        %930 = vrot.lane.b32.xlu0 %v715, 64
        %v931 = vpop.permute.xlu0 %930
        %932 = vrot.lane.b32.xlu0 %v716, 64
        %v933 = vpop.permute.xlu0 %932
        %934 = vrot.lane.b32.xlu0 %v717, 64
        %v935 = vpop.permute.xlu0 %934
        %936 = vrot.lane.b32.xlu0 %v718, 64
        %v937 = vpop.permute.xlu0 %936
        %938 = vrot.lane.b32.xlu0 %v719, 64
        %v939 = vpop.permute.xlu0 %938
        %940 = vrot.lane.b32.xlu0 %v720, 64
        %v941 = vpop.permute.xlu0 %940
        %942 = vrot.lane.b32.xlu0 %v721, 64
        %v943 = vpop.permute.xlu0 %942
        %944 = vrot.lane.b32.xlu0 %v722, 64
        %v945 = vpop.permute.xlu0 %944
        %946 = vrot.lane.b32.xlu0 %v723, 64
        %v947 = vpop.permute.xlu0 %946
        %vm980 = vcmask 261120
        %v981 = vsel %vm980, %v589, %v757
        %v982 = vsel %vm980, %v590, %v759
        %v983 = vsel %vm980, %v591, %v761
        %v984 = vsel %vm980, %v592, %v763
        %v985 = vsel %vm980, %v593, %v765
        %v986 = vsel %vm980, %v594, %v767
        %v987 = vsel %vm980, %v595, %v769
        %v988 = vsel %vm980, %v596, %v771
        %v989 = vsel %vm980, %v597, %v773
        %v990 = vsel %vm980, %v598, %v775
        %v991 = vsel %vm980, %v599, %v777
        %v992 = vsel %vm980, %v600, %v779
        %v993 = vsel %vm980, %v601, %v781
        %v994 = vsel %vm980, %v602, %v783
        %v995 = vsel %vm980, %v603, %v785
        %v996 = vsel %vm980, %v604, %v787
        %v997 = vsel %vm980, %v605, %v789
        %v998 = vsel %vm980, %v606, %v791
        %v999 = vsel %vm980, %v607, %v793
        %v1000 = vsel %vm980, %v608, %v795
        %v1001 = vsel %vm980, %v609, %v797
        %v1002 = vsel %vm980, %v610, %v799
        %v1003 = vsel %vm980, %v611, %v801
        %v1004 = vsel %vm980, %v612, %v803
        %v1005 = vsel %vm980, %v613, %v805
        %v1006 = vsel %vm980, %v614, %v807
        %v1007 = vsel %vm980, %v615, %v809
        %v1008 = vsel %vm980, %v616, %v811
        %v1009 = vsel %vm980, %v617, %v813
        %v1010 = vsel %vm980, %v618, %v815
        %v1011 = vsel %vm980, %v619, %v817
        %v1012 = vsel %vm980, %v620, %v819
        %vm1013 = vcmask 523264
        %v1014 = vsel %vm1013, %v981, %v885
        %v1015 = vsel %vm1013, %v982, %v887
        %v1016 = vsel %vm1013, %v983, %v889
        %v1017 = vsel %vm1013, %v984, %v891
        %v1018 = vsel %vm1013, %v985, %v893
        %v1019 = vsel %vm1013, %v986, %v895
        %v1020 = vsel %vm1013, %v987, %v897
        %v1021 = vsel %vm1013, %v988, %v899
        %v1022 = vsel %vm1013, %v989, %v901
        %v1023 = vsel %vm1013, %v990, %v903
        %v1024 = vsel %vm1013, %v991, %v905
        %v1025 = vsel %vm1013, %v992, %v907
        %v1026 = vsel %vm1013, %v993, %v909
        %v1027 = vsel %vm1013, %v994, %v911
        %v1028 = vsel %vm1013, %v995, %v913
        %v1029 = vsel %vm1013, %v996, %v915
        %v1030 = vsel %vm1013, %v997, %v917
        %v1031 = vsel %vm1013, %v998, %v919
        %v1032 = vsel %vm1013, %v999, %v921
        %v1033 = vsel %vm1013, %v1000, %v923
        %v1034 = vsel %vm1013, %v1001, %v925
        %v1035 = vsel %vm1013, %v1002, %v927
        %v1036 = vsel %vm1013, %v1003, %v929
        %v1037 = vsel %vm1013, %v1004, %v931
        %v1038 = vsel %vm1013, %v1005, %v933
        %v1039 = vsel %vm1013, %v1006, %v935
        %v1040 = vsel %vm1013, %v1007, %v937
        %v1041 = vsel %vm1013, %v1008, %v939
        %v1042 = vsel %vm1013, %v1009, %v941
        %v1043 = vsel %vm1013, %v1010, %v943
        %v1044 = vsel %vm1013, %v1011, %v945
        %v1045 = vsel %vm1013, %v1012, %v947
        %v1046 = vpack.c.bf16 %v1014, %v1014
        %v1047 = vpack.c.bf16 %v1015, %v1015
        %v1048 = vpack.c.bf16 %v1016, %v1016
        %v1049 = vpack.c.bf16 %v1017, %v1017
        %v1050 = vpack.c.bf16 %v1018, %v1018
        %v1051 = vpack.c.bf16 %v1019, %v1019
        %v1052 = vpack.c.bf16 %v1020, %v1020
        %v1053 = vpack.c.bf16 %v1021, %v1021
        %v1054 = vpack.c.bf16 %v1022, %v1022
        %v1055 = vpack.c.bf16 %v1023, %v1023
        %v1056 = vpack.c.bf16 %v1024, %v1024
        %v1057 = vpack.c.bf16 %v1025, %v1025
        %v1058 = vpack.c.bf16 %v1026, %v1026
        %v1059 = vpack.c.bf16 %v1027, %v1027
        %v1060 = vpack.c.bf16 %v1028, %v1028
        %v1061 = vpack.c.bf16 %v1029, %v1029
        %v1062 = vpack.c.bf16 %v1030, %v1030
        %v1063 = vpack.c.bf16 %v1031, %v1031
        %v1064 = vpack.c.bf16 %v1032, %v1032
        %v1065 = vpack.c.bf16 %v1033, %v1033
        %v1066 = vpack.c.bf16 %v1034, %v1034
        %v1067 = vpack.c.bf16 %v1035, %v1035
        %v1068 = vpack.c.bf16 %v1036, %v1036
        %v1069 = vpack.c.bf16 %v1037, %v1037
        %v1070 = vpack.c.bf16 %v1038, %v1038
        %v1071 = vpack.c.bf16 %v1039, %v1039
        %v1072 = vpack.c.bf16 %v1040, %v1040
        %v1073 = vpack.c.bf16 %v1041, %v1041
        %v1074 = vpack.c.bf16 %v1042, %v1042
        %v1075 = vpack.c.bf16 %v1043, %v1043
        %v1076 = vpack.c.bf16 %v1044, %v1044
        %v1077 = vpack.c.bf16 %v1045, %v1045
        %v1108 = vunpack.c.l.b16 %v1046
        %v1109 = vunpack.c.l.b16 %v1047
        %v1110 = vunpack.c.l.b16 %v1048
        %v1111 = vunpack.c.l.b16 %v1049
        %v1112 = vunpack.c.l.b16 %v1050
        %v1113 = vunpack.c.l.b16 %v1051
        %v1114 = vunpack.c.l.b16 %v1052
        %v1115 = vunpack.c.l.b16 %v1053
        %v1116 = vunpack.c.l.b16 %v1054
        %v1117 = vunpack.c.l.b16 %v1055
        %v1118 = vunpack.c.l.b16 %v1056
        %v1119 = vunpack.c.l.b16 %v1057
        %v1120 = vunpack.c.l.b16 %v1058
        %v1121 = vunpack.c.l.b16 %v1059
        %v1122 = vunpack.c.l.b16 %v1060
        %v1123 = vunpack.c.l.b16 %v1061
        %v1124 = vunpack.c.l.b16 %v1062
        %v1125 = vunpack.c.l.b16 %v1063
        %v1126 = vunpack.c.l.b16 %v1064
        %v1127 = vunpack.c.l.b16 %v1065
        %v1128 = vunpack.c.l.b16 %v1066
        %v1129 = vunpack.c.l.b16 %v1067
        %v1130 = vunpack.c.l.b16 %v1068
        %v1131 = vunpack.c.l.b16 %v1069
        %v1132 = vunpack.c.l.b16 %v1070
        %v1133 = vunpack.c.l.b16 %v1071
        %v1134 = vunpack.c.l.b16 %v1072
        %v1135 = vunpack.c.l.b16 %v1073
        %v1136 = vunpack.c.l.b16 %v1074
        %v1137 = vunpack.c.l.b16 %v1075
        %v1138 = vpack.c.b16 %v1109, %v1108
        %v1139 = vpack.c.b16 %v1111, %v1110
        %v1140 = vpack.c.b16 %v1113, %v1112
        %v1141 = vpack.c.b16 %v1115, %v1114
        %v1142 = vpack.c.b16 %v1117, %v1116
        %v1143 = vpack.c.b16 %v1119, %v1118
        %v1144 = vpack.c.b16 %v1121, %v1120
        %v1145 = vpack.c.b16 %v1123, %v1122
        %v1146 = vpack.c.b16 %v1125, %v1124
        %v1147 = vpack.c.b16 %v1127, %v1126
        %v1148 = vpack.c.b16 %v1129, %v1128
        %v1149 = vpack.c.b16 %v1131, %v1130
        %v1150 = vpack.c.b16 %v1133, %v1132
        %v1151 = vpack.c.b16 %v1135, %v1134
        %v1152 = vpack.c.b16 %v1137, %v1136
        %v1155 = vunpack.c.l.b16 %v1076
        %v1156 = vunpack.c.l.b16 %v1077
        %v1157 = vpack.c.b16 %v1156, %v1155
        %s1158 = scalar_lea.vmem %s2, 48
        %v1159 = vld [vmem:[%s1158] sm:$0xf]
        %v1160 = vld [vmem:[%s1158 + $0x4] sm:$0xf]
        %v1161 = vld [vmem:[%s1158 + $0x8] sm:$0xf]
        %v1162 = vld [vmem:[%s1158 + $0xc] sm:$0xf]
        %v1163 = vld [vmem:[%s1158 + $0x10] sm:$0xf]
        %v1164 = vld [vmem:[%s1158 + $0x14] sm:$0xf]
        %v1165 = vld [vmem:[%s1158 + $0x18] sm:$0xf]
        %v1166 = vld [vmem:[%s1158 + $0x1c] sm:$0xf]
        %v1167 = vld [vmem:[%s1158 + $0x20] sm:$0xf]
        %v1168 = vld [vmem:[%s1158 + $0x24] sm:$0xf]
        %v1169 = vld [vmem:[%s1158 + $0x28] sm:$0xf]
        %v1170 = vld [vmem:[%s1158 + $0x2c] sm:$0xf]
        %v1171 = vld [vmem:[%s2] sm:$0xf]
        %v1172 = vld [vmem:[%s2 + $0x4] sm:$0xf]
        %v1173 = vld [vmem:[%s2 + $0x8] sm:$0xf]
        %v1174 = vld [vmem:[%s2 + $0xc] sm:$0xf]
        %v1175 = vld [vmem:[%s2 + $0x10] sm:$0xf]
        %v1176 = vld [vmem:[%s2 + $0x14] sm:$0xf]
        %v1177 = vld [vmem:[%s2 + $0x18] sm:$0xf]
        %v1178 = vld [vmem:[%s2 + $0x1c] sm:$0xf]
        %v1179 = vld [vmem:[%s2 + $0x20] sm:$0xf]
        %v1180 = vld [vmem:[%s2 + $0x24] sm:$0xf]
        %v1181 = vld [vmem:[%s2 + $0x28] sm:$0xf]
        %v1182 = vld [vmem:[%s2 + $0x2c] sm:$0xf]
        %v1195 = vunpack.c.l.b16 %v1171
        %v1196 = vunpack.c.l.b16 %v1172
        %v1197 = vunpack.c.l.b16 %v1173
        %v1198 = vunpack.c.l.b16 %v1174
        %v1199 = vunpack.c.l.b16 %v1175
        %v1200 = vunpack.c.l.b16 %v1176
        %v1201 = vunpack.c.l.b16 %v1177
        %v1202 = vunpack.c.l.b16 %v1178
        %v1203 = vunpack.c.l.b16 %v1179
        %v1204 = vunpack.c.l.b16 %v1180
        %v1205 = vunpack.c.l.b16 %v1181
        %v1206 = vunpack.c.l.b16 %v1182
        %v1207 = vpack.c.b16 %v1196, %v1195
        %v1208 = vpack.c.b16 %v1198, %v1197
        %v1209 = vpack.c.b16 %v1200, %v1199
        %v1210 = vpack.c.b16 %v1202, %v1201
        %v1211 = vpack.c.b16 %v1204, %v1203
        %v1212 = vpack.c.b16 %v1206, %v1205
        %vm1219 = vcmask 785408
        %v1221 = vsel %vm1219, 0, 0
        %v1224 = vsel %vm1219, %v1138, 0
        %v1227 = vsel %vm1219, %v1139, 0
        %v1230 = vsel %vm1219, %v1140, 0
        %v1233 = vsel %vm1219, %v1141, 0
        %v1236 = vsel %vm1219, %v1142, 0
        %v1239 = vsel %vm1219, %v1143, 0
        %v1242 = vsel %vm1219, %v1144, 0
        %v1245 = vsel %vm1219, %v1145, 0
        %v1248 = vsel %vm1219, %v1146, 0
        %v1251 = vsel %vm1219, %v1147, 0
        %v1254 = vsel %vm1219, %v1148, 0
        %v1257 = vsel %vm1219, %v1149, 0
        %v1260 = vsel %vm1219, %v1150, 0
        %v1263 = vsel %vm1219, %v1151, 0
        %v1266 = vsel %vm1219, %v1152, 0
        %1268 = vmatpush.bf16.msra.mxu0 0
        %1269 = vmatpush.bf16.msra.mxu0 0
        %1270 = vmatpush.bf16.msra.mxu0 %v1212
        %1271 = vmatpush.bf16.msra.mxu0 %v1211
        %1272 = vmatpush.bf16.msra.mxu0 %v1210
        %1273 = vmatpush.bf16.msra.mxu0 %v1209
        %1274 = vmatpush.bf16.msra.mxu0 %v1208
        %1275 = vmatpush.bf16.msra.mxu0 %v1207
        %1276 = vmatmul.bf16.gmra.mxu0 %v1221
        %v1277 = vpop.f32.mrf.mxu0
        %v1278 = vadd.f32 0.0, %v1277
        %v1279 = vpop.f32.mrf.mxu0
        %v1280 = vadd.f32 0.0, %v1279
        %1281 = vmatmul.bf16.gmra.mxu0 %v1224
        %v1282 = vpop.f32.mrf.mxu0
        %v1283 = vadd.f32 0.0, %v1282
        %v1284 = vpop.f32.mrf.mxu0
        %v1285 = vadd.f32 0.0, %v1284
        %1286 = vmatmul.bf16.gmra.mxu0 %v1227
        %v1287 = vpop.f32.mrf.mxu0
        %v1288 = vadd.f32 0.0, %v1287
        %v1289 = vpop.f32.mrf.mxu0
        %v1290 = vadd.f32 0.0, %v1289
        %1291 = vmatmul.bf16.gmra.mxu0 %v1230
        %v1292 = vpop.f32.mrf.mxu0
        %v1293 = vadd.f32 0.0, %v1292
        %v1294 = vpop.f32.mrf.mxu0
        %v1295 = vadd.f32 0.0, %v1294
        %1296 = vmatmul.bf16.gmra.mxu0 %v1233
        %v1297 = vpop.f32.mrf.mxu0
        %v1298 = vadd.f32 0.0, %v1297
        %v1299 = vpop.f32.mrf.mxu0
        %v1300 = vadd.f32 0.0, %v1299
        %1301 = vmatmul.bf16.gmra.mxu0 %v1236
        %v1302 = vpop.f32.mrf.mxu0
        %v1303 = vadd.f32 0.0, %v1302
        %v1304 = vpop.f32.mrf.mxu0
        %v1305 = vadd.f32 0.0, %v1304
        %1306 = vmatmul.bf16.gmra.mxu0 %v1239
        %v1307 = vpop.f32.mrf.mxu0
        %v1308 = vadd.f32 0.0, %v1307
        %v1309 = vpop.f32.mrf.mxu0
        %v1310 = vadd.f32 0.0, %v1309
        %1311 = vmatmul.bf16.gmra.mxu0 %v1242
        %v1312 = vpop.f32.mrf.mxu0
        %v1313 = vadd.f32 0.0, %v1312
        %v1314 = vpop.f32.mrf.mxu0
        %v1315 = vadd.f32 0.0, %v1314
        %1316 = vmatmul.bf16.gmra.mxu0 %v1245
        %v1317 = vpop.f32.mrf.mxu0
        %v1318 = vadd.f32 0.0, %v1317
        %v1319 = vpop.f32.mrf.mxu0
        %v1320 = vadd.f32 0.0, %v1319
        %1321 = vmatmul.bf16.gmra.mxu0 %v1248
        %v1322 = vpop.f32.mrf.mxu0
        %v1323 = vadd.f32 0.0, %v1322
        %v1324 = vpop.f32.mrf.mxu0
        %v1325 = vadd.f32 0.0, %v1324
        %1326 = vmatmul.bf16.gmra.mxu0 %v1251
        %v1327 = vpop.f32.mrf.mxu0
        %v1328 = vadd.f32 0.0, %v1327
        %v1329 = vpop.f32.mrf.mxu0
        %v1330 = vadd.f32 0.0, %v1329
        %1331 = vmatmul.bf16.gmra.mxu0 %v1254
        %v1332 = vpop.f32.mrf.mxu0
        %v1333 = vadd.f32 0.0, %v1332
        %v1334 = vpop.f32.mrf.mxu0
        %v1335 = vadd.f32 0.0, %v1334
        %1336 = vmatmul.bf16.gmra.mxu0 %v1257
        %v1337 = vpop.f32.mrf.mxu0
        %v1338 = vadd.f32 0.0, %v1337
        %v1339 = vpop.f32.mrf.mxu0
        %v1340 = vadd.f32 0.0, %v1339
        %1341 = vmatmul.bf16.gmra.mxu0 %v1260
        %v1342 = vpop.f32.mrf.mxu0
        %v1343 = vadd.f32 0.0, %v1342
        %v1344 = vpop.f32.mrf.mxu0
        %v1345 = vadd.f32 0.0, %v1344
        %1346 = vmatmul.bf16.gmra.mxu0 %v1263
        %v1347 = vpop.f32.mrf.mxu0
        %v1348 = vadd.f32 0.0, %v1347
        %v1349 = vpop.f32.mrf.mxu0
        %v1350 = vadd.f32 0.0, %v1349
        %1351 = vmatmul.bf16.gmra.mxu0 %v1266
        %v1352 = vpop.f32.mrf.mxu0
        %v1353 = vadd.f32 0.0, %v1352
        %v1354 = vpop.f32.mrf.mxu0
        %v1355 = vadd.f32 0.0, %v1354
        %1356 = vdwg.mxu0
        %v1369 = vunpack.c.l.b16 %v1159
        %v1370 = vunpack.c.l.b16 %v1160
        %v1371 = vunpack.c.l.b16 %v1161
        %v1372 = vunpack.c.l.b16 %v1162
        %v1373 = vunpack.c.l.b16 %v1163
        %v1374 = vunpack.c.l.b16 %v1164
        %v1375 = vunpack.c.l.b16 %v1165
        %v1376 = vunpack.c.l.b16 %v1166
        %v1377 = vunpack.c.l.b16 %v1167
        %v1378 = vunpack.c.l.b16 %v1168
        %v1379 = vunpack.c.l.b16 %v1169
        %v1380 = vunpack.c.l.b16 %v1170
        %v1381 = vpack.c.b16 %v1370, %v1369
        %v1382 = vpack.c.b16 %v1372, %v1371
        %v1383 = vpack.c.b16 %v1374, %v1373
        %v1384 = vpack.c.b16 %v1376, %v1375
        %v1385 = vpack.c.b16 %v1378, %v1377
        %v1386 = vpack.c.b16 %v1380, %v1379
        %v1394 = vsel %vm1219, %v1157, 0
        %1396 = vmatpush.bf16.msra.mxu0 0
        %1397 = vmatpush.bf16.msra.mxu0 0
        %1398 = vmatpush.bf16.msra.mxu0 %v1386
        %1399 = vmatpush.bf16.msra.mxu0 %v1385
        %1400 = vmatpush.bf16.msra.mxu0 %v1384
        %1401 = vmatpush.bf16.msra.mxu0 %v1383
        %1402 = vmatpush.bf16.msra.mxu0 %v1382
        %1403 = vmatpush.bf16.msra.mxu0 %v1381
        %1404 = vmatmul.bf16.gmra.mxu0 %v1224
        %v1405 = vpop.f32.mrf.mxu0
        %v1406 = vadd.f32 %v1278, %v1405
        %v1407 = vpop.f32.mrf.mxu0
        %v1408 = vadd.f32 %v1280, %v1407
        %1409 = vmatmul.bf16.gmra.mxu0 %v1227
        %v1410 = vpop.f32.mrf.mxu0
        %v1411 = vadd.f32 %v1283, %v1410
        %v1412 = vpop.f32.mrf.mxu0
        %v1413 = vadd.f32 %v1285, %v1412
        %1414 = vmatmul.bf16.gmra.mxu0 %v1230
        %v1415 = vpop.f32.mrf.mxu0
        %v1416 = vadd.f32 %v1288, %v1415
        %v1417 = vpop.f32.mrf.mxu0
        %v1418 = vadd.f32 %v1290, %v1417
        %1419 = vmatmul.bf16.gmra.mxu0 %v1233
        %v1420 = vpop.f32.mrf.mxu0
        %v1421 = vadd.f32 %v1293, %v1420
        %v1422 = vpop.f32.mrf.mxu0
        %v1423 = vadd.f32 %v1295, %v1422
        %1424 = vmatmul.bf16.gmra.mxu0 %v1236
        %v1425 = vpop.f32.mrf.mxu0
        %v1426 = vadd.f32 %v1298, %v1425
        %v1427 = vpop.f32.mrf.mxu0
        %v1428 = vadd.f32 %v1300, %v1427
        %1429 = vmatmul.bf16.gmra.mxu0 %v1239
        %v1430 = vpop.f32.mrf.mxu0
        %v1431 = vadd.f32 %v1303, %v1430
        %v1432 = vpop.f32.mrf.mxu0
        %v1433 = vadd.f32 %v1305, %v1432
        %1434 = vmatmul.bf16.gmra.mxu0 %v1242
        %v1435 = vpop.f32.mrf.mxu0
        %v1436 = vadd.f32 %v1308, %v1435
        %v1437 = vpop.f32.mrf.mxu0
        %v1438 = vadd.f32 %v1310, %v1437
        %1439 = vmatmul.bf16.gmra.mxu0 %v1245
        %v1440 = vpop.f32.mrf.mxu0
        %v1441 = vadd.f32 %v1313, %v1440
        %v1442 = vpop.f32.mrf.mxu0
        %v1443 = vadd.f32 %v1315, %v1442
        %1444 = vmatmul.bf16.gmra.mxu0 %v1248
        %v1445 = vpop.f32.mrf.mxu0
        %v1446 = vadd.f32 %v1318, %v1445
        %v1447 = vpop.f32.mrf.mxu0
        %v1448 = vadd.f32 %v1320, %v1447
        %1449 = vmatmul.bf16.gmra.mxu0 %v1251
        %v1450 = vpop.f32.mrf.mxu0
        %v1451 = vadd.f32 %v1323, %v1450
        %v1452 = vpop.f32.mrf.mxu0
        %v1453 = vadd.f32 %v1325, %v1452
        %1454 = vmatmul.bf16.gmra.mxu0 %v1254
        %v1455 = vpop.f32.mrf.mxu0
        %v1456 = vadd.f32 %v1328, %v1455
        %v1457 = vpop.f32.mrf.mxu0
        %v1458 = vadd.f32 %v1330, %v1457
        %1459 = vmatmul.bf16.gmra.mxu0 %v1257
        %v1460 = vpop.f32.mrf.mxu0
        %v1461 = vadd.f32 %v1333, %v1460
        %v1462 = vpop.f32.mrf.mxu0
        %v1463 = vadd.f32 %v1335, %v1462
        %1464 = vmatmul.bf16.gmra.mxu0 %v1260
        %v1465 = vpop.f32.mrf.mxu0
        %v1466 = vadd.f32 %v1338, %v1465
        %v1467 = vpop.f32.mrf.mxu0
        %v1468 = vadd.f32 %v1340, %v1467
        %1469 = vmatmul.bf16.gmra.mxu0 %v1263
        %v1470 = vpop.f32.mrf.mxu0
        %v1471 = vadd.f32 %v1343, %v1470
        %v1472 = vpop.f32.mrf.mxu0
        %v1473 = vadd.f32 %v1345, %v1472
        %1474 = vmatmul.bf16.gmra.mxu0 %v1266
        %v1475 = vpop.f32.mrf.mxu0
        %v1476 = vadd.f32 %v1348, %v1475
        %v1477 = vpop.f32.mrf.mxu0
        %v1478 = vadd.f32 %v1350, %v1477
        %1479 = vmatmul.bf16.gmra.mxu0 %v1394
        %v1480 = vpop.f32.mrf.mxu0
        %v1481 = vadd.f32 %v1353, %v1480
        %v1482 = vpop.f32.mrf.mxu0
        %v1483 = vadd.f32 %v1355, %v1482
        %1484 = vdwg.mxu0
        %s1485 = scalar_lea.vmem %s2, 96
        %v1486 = vld [vmem:[%s1485] sm:$0xf]
        %v1487 = vld [vmem:[%s1485 + $0x4] sm:$0xf]
        %v1488 = vld [vmem:[%s1485 + $0x8] sm:$0xf]
        %v1489 = vld [vmem:[%s1485 + $0xc] sm:$0xf]
        %v1490 = vld [vmem:[%s1485 + $0x10] sm:$0xf]
        %v1491 = vld [vmem:[%s1485 + $0x14] sm:$0xf]
        %v1492 = vld [vmem:[%s1485 + $0x18] sm:$0xf]
        %v1493 = vld [vmem:[%s1485 + $0x1c] sm:$0xf]
        %v1494 = vld [vmem:[%s1485 + $0x20] sm:$0xf]
        %v1495 = vld [vmem:[%s1485 + $0x24] sm:$0xf]
        %v1496 = vld [vmem:[%s1485 + $0x28] sm:$0xf]
        %v1497 = vld [vmem:[%s1485 + $0x2c] sm:$0xf]
        %v1510 = vunpack.c.l.b16 %v1486
        %v1511 = vunpack.c.l.b16 %v1487
        %v1512 = vunpack.c.l.b16 %v1488
        %v1513 = vunpack.c.l.b16 %v1489
        %v1514 = vunpack.c.l.b16 %v1490
        %v1515 = vunpack.c.l.b16 %v1491
        %v1516 = vunpack.c.l.b16 %v1492
        %v1517 = vunpack.c.l.b16 %v1493
        %v1518 = vunpack.c.l.b16 %v1494
        %v1519 = vunpack.c.l.b16 %v1495
        %v1520 = vunpack.c.l.b16 %v1496
        %v1521 = vunpack.c.l.b16 %v1497
        %v1522 = vpack.c.b16 %v1511, %v1510
        %v1523 = vpack.c.b16 %v1513, %v1512
        %v1524 = vpack.c.b16 %v1515, %v1514
        %v1525 = vpack.c.b16 %v1517, %v1516
        %v1526 = vpack.c.b16 %v1519, %v1518
        %v1527 = vpack.c.b16 %v1521, %v1520
        %1534 = vmatpush.bf16.msra.mxu0 0
        %1535 = vmatpush.bf16.msra.mxu0 0
        %1536 = vmatpush.bf16.msra.mxu0 %v1527
        %1537 = vmatpush.bf16.msra.mxu0 %v1526
        %1538 = vmatpush.bf16.msra.mxu0 %v1525
        %1539 = vmatpush.bf16.msra.mxu0 %v1524
        %1540 = vmatpush.bf16.msra.mxu0 %v1523
        %1541 = vmatpush.bf16.msra.mxu0 %v1522
        %1542 = vmatmul.bf16.gmra.mxu0 %v1227
        %v1543 = vpop.f32.mrf.mxu0
        %v1544 = vadd.f32 0.0, %v1543
        %v1545 = vpop.f32.mrf.mxu0
        %v1546 = vadd.f32 0.0, %v1545
        %1547 = vmatmul.bf16.gmra.mxu0 %v1230
        %v1548 = vpop.f32.mrf.mxu0
        %v1549 = vadd.f32 0.0, %v1548
        %v1550 = vpop.f32.mrf.mxu0
        %v1551 = vadd.f32 0.0, %v1550
        %1552 = vmatmul.bf16.gmra.mxu0 %v1233
        %v1553 = vpop.f32.mrf.mxu0
        %v1554 = vadd.f32 0.0, %v1553
        %v1555 = vpop.f32.mrf.mxu0
        %v1556 = vadd.f32 0.0, %v1555
        %1557 = vmatmul.bf16.gmra.mxu0 %v1236
        %v1558 = vpop.f32.mrf.mxu0
        %v1559 = vadd.f32 0.0, %v1558
        %v1560 = vpop.f32.mrf.mxu0
        %v1561 = vadd.f32 0.0, %v1560
        %1562 = vmatmul.bf16.gmra.mxu0 %v1239
        %v1563 = vpop.f32.mrf.mxu0
        %v1564 = vadd.f32 0.0, %v1563
        %v1565 = vpop.f32.mrf.mxu0
        %v1566 = vadd.f32 0.0, %v1565
        %1567 = vmatmul.bf16.gmra.mxu0 %v1242
        %v1568 = vpop.f32.mrf.mxu0
        %v1569 = vadd.f32 0.0, %v1568
        %v1570 = vpop.f32.mrf.mxu0
        %v1571 = vadd.f32 0.0, %v1570
        %1572 = vmatmul.bf16.gmra.mxu0 %v1245
        %v1573 = vpop.f32.mrf.mxu0
        %v1574 = vadd.f32 0.0, %v1573
        %v1575 = vpop.f32.mrf.mxu0
        %v1576 = vadd.f32 0.0, %v1575
        %1577 = vmatmul.bf16.gmra.mxu0 %v1248
        %v1578 = vpop.f32.mrf.mxu0
        %v1579 = vadd.f32 0.0, %v1578
        %v1580 = vpop.f32.mrf.mxu0
        %v1581 = vadd.f32 0.0, %v1580
        %1582 = vmatmul.bf16.gmra.mxu0 %v1251
        %v1583 = vpop.f32.mrf.mxu0
        %v1584 = vadd.f32 0.0, %v1583
        %v1585 = vpop.f32.mrf.mxu0
        %v1586 = vadd.f32 0.0, %v1585
        %1587 = vmatmul.bf16.gmra.mxu0 %v1254
        %v1588 = vpop.f32.mrf.mxu0
        %v1589 = vadd.f32 0.0, %v1588
        %v1590 = vpop.f32.mrf.mxu0
        %v1591 = vadd.f32 0.0, %v1590
        %1592 = vmatmul.bf16.gmra.mxu0 %v1257
        %v1593 = vpop.f32.mrf.mxu0
        %v1594 = vadd.f32 0.0, %v1593
        %v1595 = vpop.f32.mrf.mxu0
        %v1596 = vadd.f32 0.0, %v1595
        %1597 = vmatmul.bf16.gmra.mxu0 %v1260
        %v1598 = vpop.f32.mrf.mxu0
        %v1599 = vadd.f32 0.0, %v1598
        %v1600 = vpop.f32.mrf.mxu0
        %v1601 = vadd.f32 0.0, %v1600
        %1602 = vmatmul.bf16.gmra.mxu0 %v1263
        %v1603 = vpop.f32.mrf.mxu0
        %v1604 = vadd.f32 0.0, %v1603
        %v1605 = vpop.f32.mrf.mxu0
        %v1606 = vadd.f32 0.0, %v1605
        %1607 = vmatmul.bf16.gmra.mxu0 %v1266
        %v1608 = vpop.f32.mrf.mxu0
        %v1609 = vadd.f32 0.0, %v1608
        %v1610 = vpop.f32.mrf.mxu0
        %v1611 = vadd.f32 0.0, %v1610
        %1612 = vmatmul.bf16.gmra.mxu0 %v1394
        %v1613 = vpop.f32.mrf.mxu0
        %v1614 = vadd.f32 0.0, %v1613
        %v1615 = vpop.f32.mrf.mxu0
        %v1616 = vadd.f32 0.0, %v1615
        %1617 = vmatmul.bf16.gmra.mxu0 %v1221
        %v1618 = vpop.f32.mrf.mxu0
        %v1619 = vadd.f32 0.0, %v1618
        %v1620 = vpop.f32.mrf.mxu0
        %v1621 = vadd.f32 0.0, %v1620
        %1622 = vdwg.mxu0
        %v1623 = vadd.f32 %v1406, %v1544
        %v1624 = vadd.f32 %v1408, %v1546
        %v1625 = vadd.f32 %v1411, %v1549
        %v1626 = vadd.f32 %v1413, %v1551
        %v1627 = vadd.f32 %v1416, %v1554
        %v1628 = vadd.f32 %v1418, %v1556
        %v1629 = vadd.f32 %v1421, %v1559
        %v1630 = vadd.f32 %v1423, %v1561
        %v1631 = vadd.f32 %v1426, %v1564
        %v1632 = vadd.f32 %v1428, %v1566
        %v1633 = vadd.f32 %v1431, %v1569
        %v1634 = vadd.f32 %v1433, %v1571
        %v1635 = vadd.f32 %v1436, %v1574
        %v1636 = vadd.f32 %v1438, %v1576
        %v1637 = vadd.f32 %v1441, %v1579
        %v1638 = vadd.f32 %v1443, %v1581
        %v1639 = vadd.f32 %v1446, %v1584
        %v1640 = vadd.f32 %v1448, %v1586
        %v1641 = vadd.f32 %v1451, %v1589
        %v1642 = vadd.f32 %v1453, %v1591
        %v1643 = vadd.f32 %v1456, %v1594
        %v1644 = vadd.f32 %v1458, %v1596
        %v1645 = vadd.f32 %v1461, %v1599
        %v1646 = vadd.f32 %v1463, %v1601
        %v1647 = vadd.f32 %v1466, %v1604
        %v1648 = vadd.f32 %v1468, %v1606
        %v1649 = vadd.f32 %v1471, %v1609
        %v1650 = vadd.f32 %v1473, %v1611
        %v1651 = vadd.f32 %v1476, %v1614
        %v1652 = vadd.f32 %v1478, %v1616
        %v1653 = vadd.f32 %v1481, %v1619
        %v1654 = vadd.f32 %v1483, %v1621
        %v1655 = vld [vmem:[%s5] sm:$0x1]
        %v1657 = vperm.slane %v1655, 0
        %v1659 = vadd.f32 %v1623, %v1657
        %v1660 = vadd.f32 %v1624, %v1657
        %v1661 = vadd.f32 %v1625, %v1657
        %v1662 = vadd.f32 %v1626, %v1657
        %v1663 = vadd.f32 %v1627, %v1657
        %v1664 = vadd.f32 %v1628, %v1657
        %v1665 = vadd.f32 %v1629, %v1657
        %v1666 = vadd.f32 %v1630, %v1657
        %v1667 = vadd.f32 %v1631, %v1657
        %v1668 = vadd.f32 %v1632, %v1657
        %v1669 = vadd.f32 %v1633, %v1657
        %v1670 = vadd.f32 %v1634, %v1657
        %v1671 = vadd.f32 %v1635, %v1657
        %v1672 = vadd.f32 %v1636, %v1657
        %v1673 = vadd.f32 %v1637, %v1657
        %v1674 = vadd.f32 %v1638, %v1657
        %v1675 = vadd.f32 %v1639, %v1657
        %v1676 = vadd.f32 %v1640, %v1657
        %v1677 = vadd.f32 %v1641, %v1657
        %v1678 = vadd.f32 %v1642, %v1657
        %v1679 = vadd.f32 %v1643, %v1657
        %v1680 = vadd.f32 %v1644, %v1657
        %v1681 = vadd.f32 %v1645, %v1657
        %v1682 = vadd.f32 %v1646, %v1657
        %v1683 = vadd.f32 %v1647, %v1657
        %v1684 = vadd.f32 %v1648, %v1657
        %v1685 = vadd.f32 %v1649, %v1657
        %v1686 = vadd.f32 %v1650, %v1657
        %v1687 = vadd.f32 %v1651, %v1657
        %v1688 = vadd.f32 %v1652, %v1657
        %v1689 = vadd.f32 %v1653, %v1657
        %v1690 = vadd.f32 %v1654, %v1657
        %v1691 = vmax.f32 %v1659, 0.0
        %v1692 = vmax.f32 %v1660, 0.0
        %v1693 = vmax.f32 %v1661, 0.0
        %v1694 = vmax.f32 %v1662, 0.0
        %v1695 = vmax.f32 %v1663, 0.0
        %v1696 = vmax.f32 %v1664, 0.0
        %v1697 = vmax.f32 %v1665, 0.0
        %v1698 = vmax.f32 %v1666, 0.0
        %v1699 = vmax.f32 %v1667, 0.0
        %v1700 = vmax.f32 %v1668, 0.0
        %v1701 = vmax.f32 %v1669, 0.0
        %v1702 = vmax.f32 %v1670, 0.0
        %v1703 = vmax.f32 %v1671, 0.0
        %v1704 = vmax.f32 %v1672, 0.0
        %v1705 = vmax.f32 %v1673, 0.0
        %v1706 = vmax.f32 %v1674, 0.0
        %v1707 = vmax.f32 %v1675, 0.0
        %v1708 = vmax.f32 %v1676, 0.0
        %v1709 = vmax.f32 %v1677, 0.0
        %v1710 = vmax.f32 %v1678, 0.0
        %v1711 = vmax.f32 %v1679, 0.0
        %v1712 = vmax.f32 %v1680, 0.0
        %v1713 = vmax.f32 %v1681, 0.0
        %v1714 = vmax.f32 %v1682, 0.0
        %v1715 = vmax.f32 %v1683, 0.0
        %v1716 = vmax.f32 %v1684, 0.0
        %v1717 = vmax.f32 %v1685, 0.0
        %v1718 = vmax.f32 %v1686, 0.0
        %v1719 = vmax.f32 %v1687, 0.0
        %v1720 = vmax.f32 %v1688, 0.0
        %v1721 = vmax.f32 %v1689, 0.0
        %v1722 = vmax.f32 %v1690, 0.0
        %v1723 = vpack.c.bf16 %v1692, %v1691
        %v1724 = vpack.c.bf16 %v1694, %v1693
        %v1725 = vpack.c.bf16 %v1696, %v1695
        %v1726 = vpack.c.bf16 %v1698, %v1697
        %v1727 = vpack.c.bf16 %v1700, %v1699
        %v1728 = vpack.c.bf16 %v1702, %v1701
        %v1729 = vpack.c.bf16 %v1704, %v1703
        %v1730 = vpack.c.bf16 %v1706, %v1705
        %v1731 = vpack.c.bf16 %v1708, %v1707
        %v1732 = vpack.c.bf16 %v1710, %v1709
        %v1733 = vpack.c.bf16 %v1712, %v1711
        %v1734 = vpack.c.bf16 %v1714, %v1713
        %v1735 = vpack.c.bf16 %v1716, %v1715
        %v1736 = vpack.c.bf16 %v1718, %v1717
        %v1737 = vpack.c.bf16 %v1720, %v1719
        %v1738 = vpack.c.bf16 %v1722, %v1721
        %v1739 = vld [vmem:[%s3] sm:$0xf]
        %v1740 = vld [vmem:[%s3 + $0x4] sm:$0xf]
        %v1741 = vld [vmem:[%s3 + $0x8] sm:$0xf]
        %v1742 = vld [vmem:[%s3 + $0xc] sm:$0xf]
        %v1743 = vld [vmem:[%s6] sm:$0x1]
        %v1745 = vperm.slane %v1743, 0
        %v1751 = vunpack.c.l.b16 %v1739
        %v1752 = vunpack.c.l.b16 %v1740
        %v1753 = vunpack.c.l.b16 %v1741
        %v1754 = vunpack.c.l.b16 %v1742
        %v1755 = vpack.c.b16 %v1752, %v1751
        %v1756 = vpack.c.b16 %v1754, %v1753
        %v1760 = vsel %vm980, %v1723, 0
        %v1763 = vsel %vm980, %v1724, 0
        %v1766 = vsel %vm980, %v1725, 0
        %v1769 = vsel %vm980, %v1726, 0
        %v1772 = vsel %vm980, %v1727, 0
        %v1775 = vsel %vm980, %v1728, 0
        %v1778 = vsel %vm980, %v1729, 0
        %v1781 = vsel %vm980, %v1730, 0
        %v1784 = vsel %vm980, %v1731, 0
        %v1787 = vsel %vm980, %v1732, 0
        %v1790 = vsel %vm980, %v1733, 0
        %v1793 = vsel %vm980, %v1734, 0
        %v1796 = vsel %vm980, %v1735, 0
        %v1799 = vsel %vm980, %v1736, 0
        %v1802 = vsel %vm980, %v1737, 0
        %v1805 = vsel %vm980, %v1738, 0
        %1807 = vmatpush.bf16.msra.mxu0 0
        %1808 = vmatpush.bf16.msra.mxu0 0
        %1809 = vmatpush.bf16.msra.mxu0 0
        %1810 = vmatpush.bf16.msra.mxu0 0
        %1811 = vmatpush.bf16.msra.mxu0 0
        %1812 = vmatpush.bf16.msra.mxu0 0
        %1813 = vmatpush.bf16.msra.mxu0 %v1756
        %1814 = vmatpush.bf16.msra.mxu0 %v1755
        %1815 = vmatmul.bf16.gmra.mxu0 %v1760
        %v1816 = vpop.f32.mrf.mxu0
        %v1817 = vadd.f32 %v1745, %v1816
        %v1818 = vpop.f32.mrf.mxu0
        %v1819 = vadd.f32 %v1745, %v1818
        %1820 = vmatmul.bf16.gmra.mxu0 %v1763
        %v1821 = vpop.f32.mrf.mxu0
        %v1822 = vadd.f32 %v1745, %v1821
        %v1823 = vpop.f32.mrf.mxu0
        %v1824 = vadd.f32 %v1745, %v1823
        %1825 = vmatmul.bf16.gmra.mxu0 %v1766
        %v1826 = vpop.f32.mrf.mxu0
        %v1827 = vadd.f32 %v1745, %v1826
        %v1828 = vpop.f32.mrf.mxu0
        %v1829 = vadd.f32 %v1745, %v1828
        %1830 = vmatmul.bf16.gmra.mxu0 %v1769
        %v1831 = vpop.f32.mrf.mxu0
        %v1832 = vadd.f32 %v1745, %v1831
        %v1833 = vpop.f32.mrf.mxu0
        %v1834 = vadd.f32 %v1745, %v1833
        %1835 = vmatmul.bf16.gmra.mxu0 %v1772
        %v1836 = vpop.f32.mrf.mxu0
        %v1837 = vadd.f32 %v1745, %v1836
        %v1838 = vpop.f32.mrf.mxu0
        %v1839 = vadd.f32 %v1745, %v1838
        %1840 = vmatmul.bf16.gmra.mxu0 %v1775
        %v1841 = vpop.f32.mrf.mxu0
        %v1842 = vadd.f32 %v1745, %v1841
        %v1843 = vpop.f32.mrf.mxu0
        %v1844 = vadd.f32 %v1745, %v1843
        %1845 = vmatmul.bf16.gmra.mxu0 %v1778
        %v1846 = vpop.f32.mrf.mxu0
        %v1847 = vadd.f32 %v1745, %v1846
        %v1848 = vpop.f32.mrf.mxu0
        %v1849 = vadd.f32 %v1745, %v1848
        %1850 = vmatmul.bf16.gmra.mxu0 %v1781
        %v1851 = vpop.f32.mrf.mxu0
        %v1852 = vadd.f32 %v1745, %v1851
        %v1853 = vpop.f32.mrf.mxu0
        %v1854 = vadd.f32 %v1745, %v1853
        %1855 = vmatmul.bf16.gmra.mxu0 %v1784
        %v1856 = vpop.f32.mrf.mxu0
        %v1857 = vadd.f32 %v1745, %v1856
        %v1858 = vpop.f32.mrf.mxu0
        %v1859 = vadd.f32 %v1745, %v1858
        %1860 = vmatmul.bf16.gmra.mxu0 %v1787
        %v1861 = vpop.f32.mrf.mxu0
        %v1862 = vadd.f32 %v1745, %v1861
        %v1863 = vpop.f32.mrf.mxu0
        %v1864 = vadd.f32 %v1745, %v1863
        %1865 = vmatmul.bf16.gmra.mxu0 %v1790
        %v1866 = vpop.f32.mrf.mxu0
        %v1867 = vadd.f32 %v1745, %v1866
        %v1868 = vpop.f32.mrf.mxu0
        %v1869 = vadd.f32 %v1745, %v1868
        %1870 = vmatmul.bf16.gmra.mxu0 %v1793
        %v1871 = vpop.f32.mrf.mxu0
        %v1872 = vadd.f32 %v1745, %v1871
        %v1873 = vpop.f32.mrf.mxu0
        %v1874 = vadd.f32 %v1745, %v1873
        %1875 = vmatmul.bf16.gmra.mxu0 %v1796
        %v1876 = vpop.f32.mrf.mxu0
        %v1877 = vadd.f32 %v1745, %v1876
        %v1878 = vpop.f32.mrf.mxu0
        %v1879 = vadd.f32 %v1745, %v1878
        %1880 = vmatmul.bf16.gmra.mxu0 %v1799
        %v1881 = vpop.f32.mrf.mxu0
        %v1882 = vadd.f32 %v1745, %v1881
        %v1883 = vpop.f32.mrf.mxu0
        %v1884 = vadd.f32 %v1745, %v1883
        %1885 = vmatmul.bf16.gmra.mxu0 %v1802
        %v1886 = vpop.f32.mrf.mxu0
        %v1887 = vadd.f32 %v1745, %v1886
        %v1888 = vpop.f32.mrf.mxu0
        %v1889 = vadd.f32 %v1745, %v1888
        %1890 = vmatmul.bf16.gmra.mxu0 %v1805
        %v1891 = vpop.f32.mrf.mxu0
        %v1892 = vadd.f32 %v1745, %v1891
        %v1893 = vpop.f32.mrf.mxu0
        %v1894 = vadd.f32 %v1745, %v1893
        %1895 = vdwg.mxu0
        %v1896 = vadd.f32 %v1817, %v278
        %v1897 = vadd.f32 %v1819, %v279
        %v1898 = vadd.f32 %v1822, %v280
        %v1899 = vadd.f32 %v1824, %v281
        %v1900 = vadd.f32 %v1827, %v282
        %v1901 = vadd.f32 %v1829, %v283
        %v1902 = vadd.f32 %v1832, %v284
        %v1903 = vadd.f32 %v1834, %v285
        %v1904 = vadd.f32 %v1837, %v286
        %v1905 = vadd.f32 %v1839, %v287
        %v1906 = vadd.f32 %v1842, %v288
        %v1907 = vadd.f32 %v1844, %v289
        %v1908 = vadd.f32 %v1847, %v290
        %v1909 = vadd.f32 %v1849, %v291
        %v1910 = vadd.f32 %v1852, %v292
        %v1911 = vadd.f32 %v1854, %v293
        %v1912 = vadd.f32 %v1857, %v294
        %v1913 = vadd.f32 %v1859, %v295
        %v1914 = vadd.f32 %v1862, %v296
        %v1915 = vadd.f32 %v1864, %v297
        %v1916 = vadd.f32 %v1867, %v298
        %v1917 = vadd.f32 %v1869, %v299
        %v1918 = vadd.f32 %v1872, %v300
        %v1919 = vadd.f32 %v1874, %v301
        %v1920 = vadd.f32 %v1877, %v302
        %v1921 = vadd.f32 %v1879, %v303
        %v1922 = vadd.f32 %v1882, %v304
        %v1923 = vadd.f32 %v1884, %v305
        %v1924 = vadd.f32 %v1887, %v306
        %v1925 = vadd.f32 %v1889, %v307
        %v1926 = vadd.f32 %v1892, %v308
        %v1927 = vadd.f32 %v1894, %v309
        %v1928 = vmax.f32 %v1896, 0.0
        %v1929 = vmax.f32 %v1897, 0.0
        %v1930 = vmax.f32 %v1898, 0.0
        %v1931 = vmax.f32 %v1899, 0.0
        %v1932 = vmax.f32 %v1900, 0.0
        %v1933 = vmax.f32 %v1901, 0.0
        %v1934 = vmax.f32 %v1902, 0.0
        %v1935 = vmax.f32 %v1903, 0.0
        %v1936 = vmax.f32 %v1904, 0.0
        %v1937 = vmax.f32 %v1905, 0.0
        %v1938 = vmax.f32 %v1906, 0.0
        %v1939 = vmax.f32 %v1907, 0.0
        %v1940 = vmax.f32 %v1908, 0.0
        %v1941 = vmax.f32 %v1909, 0.0
        %v1942 = vmax.f32 %v1910, 0.0
        %v1943 = vmax.f32 %v1911, 0.0
        %v1944 = vmax.f32 %v1912, 0.0
        %v1945 = vmax.f32 %v1913, 0.0
        %v1946 = vmax.f32 %v1914, 0.0
        %v1947 = vmax.f32 %v1915, 0.0
        %v1948 = vmax.f32 %v1916, 0.0
        %v1949 = vmax.f32 %v1917, 0.0
        %v1950 = vmax.f32 %v1918, 0.0
        %v1951 = vmax.f32 %v1919, 0.0
        %v1952 = vmax.f32 %v1920, 0.0
        %v1953 = vmax.f32 %v1921, 0.0
        %v1954 = vmax.f32 %v1922, 0.0
        %v1955 = vmax.f32 %v1923, 0.0
        %v1956 = vmax.f32 %v1924, 0.0
        %v1957 = vmax.f32 %v1925, 0.0
        %v1958 = vmax.f32 %v1926, 0.0
        %v1959 = vmax.f32 %v1927, 0.0
        %1960 = vst [vmem:[%s271] sm:$0xff] %v1928
        %1961 = vst [vmem:[%s271 + $0x8] sm:$0xff] %v1929
        %1962 = vst [vmem:[%s271 + $0x10] sm:$0xff] %v1930
        %1963 = vst [vmem:[%s271 + $0x18] sm:$0xff] %v1931
        %1964 = vst [vmem:[%s271 + $0x20] sm:$0xff] %v1932
        %1965 = vst [vmem:[%s271 + $0x28] sm:$0xff] %v1933
        %1966 = vst [vmem:[%s271 + $0x30] sm:$0xff] %v1934
        %1967 = vst [vmem:[%s271 + $0x38] sm:$0xff] %v1935
        %1968 = vst [vmem:[%s271 + $0x40] sm:$0xff] %v1936
        %1969 = vst [vmem:[%s271 + $0x48] sm:$0xff] %v1937
        %1970 = vst [vmem:[%s271 + $0x50] sm:$0xff] %v1938
        %1971 = vst [vmem:[%s271 + $0x58] sm:$0xff] %v1939
        %1972 = vst [vmem:[%s271 + $0x60] sm:$0xff] %v1940
        %1973 = vst [vmem:[%s271 + $0x68] sm:$0xff] %v1941
        %1974 = vst [vmem:[%s271 + $0x70] sm:$0xff] %v1942
        %1975 = vst [vmem:[%s271 + $0x78] sm:$0xff] %v1943
        %1976 = vst [vmem:[%s271 + $0x80] sm:$0xff] %v1944
        %1977 = vst [vmem:[%s271 + $0x88] sm:$0xff] %v1945
        %1978 = vst [vmem:[%s271 + $0x90] sm:$0xff] %v1946
        %1979 = vst [vmem:[%s271 + $0x98] sm:$0xff] %v1947
        %1980 = vst [vmem:[%s271 + $0xa0] sm:$0xff] %v1948
        %1981 = vst [vmem:[%s271 + $0xa8] sm:$0xff] %v1949
        %1982 = vst [vmem:[%s271 + $0xb0] sm:$0xff] %v1950
        %1983 = vst [vmem:[%s271 + $0xb8] sm:$0xff] %v1951
        %1984 = vst [vmem:[%s271 + $0xc0] sm:$0xff] %v1952
        %1985 = vst [vmem:[%s271 + $0xc8] sm:$0xff] %v1953
        %1986 = vst [vmem:[%s271 + $0xd0] sm:$0xff] %v1954
        %1987 = vst [vmem:[%s271 + $0xd8] sm:$0xff] %v1955
        %1988 = vst [vmem:[%s271 + $0xe0] sm:$0xff] %v1956
        %1989 = vst [vmem:[%s271 + $0xe8] sm:$0xff] %v1957
        %1990 = vst [vmem:[%s271 + $0xf0] sm:$0xff] %v1958
        %1991 = vst [vmem:[%s271 + $0xf8] sm:$0xff] %v1959
        %s1992 = sand.u32 %s181, 1
        %s1993 = scalar_lea.sflag [#allocation3], %s1992
        %s1994 = sand.u32 %s181, 1
        %s1995 = smul.addr %s1994, 256
        %s1996 = scalar_lea.vmem [#allocation2], %s1995
        // Predicated region
        $region49: #{bottleneck_forward.1} parent=47 // pred_check
          %p1997 = pneg %p191
        $region50: #{bottleneck_forward.1} parent=47 // pred_check_branch
          %1999 = sbr.rel (%p1997) target = $region52
        $region51: #{bottleneck_forward.1} parent=47 // pred_region
          %2001 = vsyncadd %s1993, 0
          %s2002 = smul.addr %s21, 32
          %s2003 = smul.addr %s2002, 8
          %s2004 = scalar_lea.hbm %s7, %s2003
          %s2005 = sshll.u32 %s1996, 4
          %s2006 = int_to_ptr.vmem [resolvable:$true] %s2005
          %s2007 = sshll.u32 %s2004, 4
          %s2008 = int_to_ptr.hbm [resolvable:$true] %s2007
          %2013 = dma.vmem_to_hbm [thread:$0]  %s2006, 4096, %s2008, %s1993, 128, 128, 8
        $region52: #{bottleneck_forward.1} parent=47 // pred_fallthru
          _
      $region48: #{bottleneck_forward.1} parent=5 // pred_fallthru
        _
      %p2014 = scmp.le.s32.totalorder 2, %s16
      // Predicated region
      $region53: #{bottleneck_forward.1} parent=5 // pred_check
        %p2015 = pneg %p2014
      $region54: #{bottleneck_forward.1} parent=5 // pred_check_branch
        %2017 = sbr.rel (%p2015) target = $region56
      $region55: #{bottleneck_forward.1} parent=5 // pred_region
        %s2018 = ssub.s32 %s16, 2
        // Predicated region
        $region57: #{bottleneck_forward.1} parent=55 // pred_check
          %p2019 = pneg %p197
        $region58: #{bottleneck_forward.1} parent=55 // pred_check_branch
          %2021 = sbr.rel (%p2019) target = $region60
        $region59: #{bottleneck_forward.1} parent=55 // pred_region
          %s2022 = sand.u32 %s182, 1
          %s2023 = scalar_lea.sflag [#allocation3], %s2022
          %s2024 = sand.u32 %s182, 1
          %s2025 = smul.addr %s2024, 256
          %s2026 = scalar_lea.vmem [#allocation2], %s2025
          %2028 = dma.done %s2023, 4096
        $region60: #{bottleneck_forward.1} parent=55 // pred_fallthru
          _
      $region56: #{bottleneck_forward.1} parent=5 // pred_fallthru
        _
    $region6: #{bottleneck_forward.1} parent=1 // loop_footer
      %s20 = sadd.s32 1, %s16
    $region7: #{bottleneck_forward.1} parent=1 // loop_footer_branch
      %15 = sbr.rel target = $region3
    $region8: #{bottleneck_forward.1} parent=1 // loop_exit
      _
    %2029 = vsyncpa [#allocation3], 1
    %s2030 = scalar_lea.sflag [#allocation3], 1
    %2031 = vsyncpa %s2030, 1

</llo_original>
